<compile_context>
chip_gen: v7x
topology: tpu7x:2x2x1
jax: 0.10.0
libtpu: 0.0.40
codegen_flags: <defaults>
</compile_context>

<pallas_src>
import jax
import jax.numpy as jnp
from jax.experimental import pallas as pl
from jax.experimental.pallas import tpu as pltpu

EPS = 1e-5

# ---- model hyperparameters (match the PyTorch module defaults) -------------
CAT_SIZES = [24, 2, 7]                                     # hour, am_pm, weekday
EMB_SZS = [(s, min(50, (s + 1) // 2)) for s in CAT_SIZES]  # [(24,12),(2,1),(7,4)]
N_EMB = sum(nf for _, nf in EMB_SZS)                       # 17
N_CONT = 6
N_IN = N_EMB + N_CONT                                      # 23
LAYERS = [200, 100]
OUT_SZ = 1

# ---- padded / lane-friendly dims --------------------------------------------
CAT_OFFS = (0, CAT_SIZES[0], CAT_SIZES[0] + CAT_SIZES[1])  # (0, 24, 26)
ONEHOT_PAD = 128   # combined one-hot index space 33 -> 128 lanes
EMB_PAD = 128      # concatenated embedding width 17 -> 128 lanes
PAD_H1 = 256       # hidden 200 -> 256
PAD_H2 = 128       # hidden 100 -> 128


def _round_up(x, m):
    return (x + m - 1) // m * m


# =============================================================================
# Kernel: one-hot embedding gather + 3-layer MLP, packed lane-dense output.
# =============================================================================
def tabular_kernel(xcat_ref, xcont_ref, emb_ref, w1e_ref, w1c_ref, b1_ref,
                   w2_ref, b2_ref, w3_ref, b3_ref, out_ref):
    tb = xcat_ref.shape[0]
    xcat = xcat_ref[...]                                        # (tb, 3) int32

    # --- fused embedding lookup: exact one-hot gather on the MXU ------------
    lane = jax.lax.broadcasted_iota(jnp.int32, (tb, ONEHOT_PAD), 1)
    mh = ((lane == xcat[:, 0:1] + CAT_OFFS[0])
          | (lane == xcat[:, 1:2] + CAT_OFFS[1])
          | (lane == xcat[:, 2:3] + CAT_OFFS[2])).astype(jnp.float32)
    # (tb,128) @ (128,128): concatenated embeddings land in lanes 0..16.
    emb = jnp.dot(mh, emb_ref[...], preferred_element_type=jnp.float32)

    # --- layer 1: Linear(23 -> 200) [bn_cont folded] + ReLU ------------------
    h = jnp.dot(emb, w1e_ref[...], preferred_element_type=jnp.float32)
    h = h + jnp.dot(xcont_ref[...], w1c_ref[...],
                    preferred_element_type=jnp.float32)
    h = jnp.maximum(h + b1_ref[...], 0.0)                       # (tb, 256)

    # --- layer 2: Linear(200 -> 100) [bn1 folded] + ReLU ---------------------
    h = jnp.dot(h, w2_ref[...], preferred_element_type=jnp.float32) + b2_ref[...]
    h = jnp.maximum(h, 0.0)                                     # (tb, 128)

    # --- output: Linear(100 -> 1) [bn2 folded], packed one row per lane ------
    y = jnp.dot(w3_ref[...], h.T, preferred_element_type=jnp.float32)  # (8, tb)
    out_ref[...] = y[0:1, :] + b3_ref[0]


# =============================================================================
# Parameter prep: fold eval-mode BatchNorms into the Linears, build the
# block-diagonal combined embedding table, pad to lane-friendly shapes.
# =============================================================================
def prepare_params(p):
    def bn_scale_shift(g, b, m, v):
        s = g * jax.lax.rsqrt(v + EPS)
        return s, b - m * s

    # bn_cont precedes Linear1 -> scale into its continuous rows, shift into b1.
    s_c, t_c = bn_scale_shift(p["bnc_g"], p["bnc_b"], p["bnc_m"], p["bnc_v"])
    w1 = p["w1"]                                    # (23, 200)
    w1e = w1[:N_EMB]                                # (17, 200)
    w1c = s_c.reshape(N_CONT, 1) * w1[N_EMB:]       # (6, 200)
    b1 = p["b1"] + t_c @ w1[N_EMB:]

    # bn1 / bn2 follow the ReLUs -> fold into Linear2 / Linear3.
    s1, t1 = bn_scale_shift(p["bn1_g"], p["bn1_b"], p["bn1_m"], p["bn1_v"])
    w2 = s1.reshape(LAYERS[0], 1) * p["w2"]
    b2 = p["b2"] + t1 @ p["w2"]

    s2, t2 = bn_scale_shift(p["bn2_g"], p["bn2_b"], p["bn2_m"], p["bn2_v"])
    w3 = s2.reshape(LAYERS[1], 1) * p["w3"]         # (100, 1)
    b3 = (p["b3"] + t2 @ p["w3"]).reshape(1)        # scalar bias, added on VPU

    # Block-diagonal combined embedding table: one-hot index space (rows,
    # offsets CAT_OFFS) -> concatenated embedding features (cols).  Kept
    # separate from w1e so in-kernel multiplies use the SAME values as the
    # reference (exact row selection), independent of MXU precision mode.
    E = jnp.zeros((ONEHOT_PAD, EMB_PAD), jnp.float32)
    r = c = 0
    for t in p["emb_tables"]:
        ni, nf = t.shape
        E = E.at[r:r + ni, c:c + nf].set(t.astype(jnp.float32))
        r += ni
        c += nf

    def pad2(a, rows, cols):
        return jnp.pad(a, ((0, rows - a.shape[0]), (0, cols - a.shape[1])))

    return {
        "emb": E,
        "w1e": pad2(w1e, EMB_PAD, PAD_H1),
        "w1c": pad2(w1c, N_CONT, PAD_H1),
        "b1": pad2(b1, 1, PAD_H1),
        "w2": pad2(w2, PAD_H1, PAD_H2),
        "b2": pad2(b2, 1, PAD_H2),
        "w3": pad2(w3.T, 8, PAD_H2),                # row 0 = folded w3^T
        "b3": b3,
    }


# =============================================================================
# Wrapper: batch-tiled grid, raw categorical/continuous inputs go straight in.
# =============================================================================
def tabular_forward(x_cat, x_cont, params, *, tb_max=1024):
    """x_cat: (B, 3) integer category indices, x_cont: (B, 6) float32."""
    fp = prepare_params(params)
    B = x_cat.shape[0]
    x_cat = x_cat.astype(jnp.int32)
    x_cont = x_cont.astype(jnp.float32)

    # Batch tile: multiple of 128 (lane-dense packed output), capped at tb_max
    # (VMEM-friendly on v7x's 64 MiB part) and small enough that the grid has
    # >= 2 "parallel" steps whenever B allows it (keeps both v7x TCs busy).
    tb = max(128, min(tb_max, _round_up((B + 1) // 2, 128)))
    bp = _round_up(B, tb)
    if bp != B:  # zero-pad the ragged tail; the extra rows are sliced off below
        x_cat = jnp.pad(x_cat, ((0, bp - B), (0, 0)))
        x_cont = jnp.pad(x_cont, ((0, bp - B), (0, 0)))

    grid = (bp // tb,)

    def const(shape):  # weights/biases: constant index map, VMEM-resident
        return pl.BlockSpec(shape, lambda i: (0, 0))

    out = pl.pallas_call(
        tabular_kernel,
        out_shape=jax.ShapeDtypeStruct((1, bp), jnp.float32),
        grid=grid,
        in_specs=[
            pl.BlockSpec((tb, len(CAT_SIZES)), lambda i: (i, 0)),   # x_cat tile
            pl.BlockSpec((tb, N_CONT), lambda i: (i, 0)),           # x_cont tile
            const((ONEHOT_PAD, EMB_PAD)),                           # emb table
            const((EMB_PAD, PAD_H1)),                               # w1 (emb rows)
            const((N_CONT, PAD_H1)),                                # w1 (cont rows)
            const((1, PAD_H1)),                                     # b1
            const((PAD_H1, PAD_H2)),                                # w2
            const((1, PAD_H2)),                                     # b2
            const((8, PAD_H2)),                                     # w3 (row 0)
            pl.BlockSpec(memory_space=pltpu.MemorySpace.SMEM),      # b3 scalar
        ],
        out_specs=pl.BlockSpec((1, tb), lambda i: (0, i)),
        compiler_params=pltpu.CompilerParams(
            dimension_semantics=("parallel",),
            vmem_limit_bytes=32 * 1024 * 1024,
        ),
    )(x_cat, x_cont, fp["emb"], fp["w1e"], fp["w1c"], fp["b1"],
      fp["w2"], fp["b2"], fp["w3"], fp["b3"])

    return out[0, :B].reshape(B, OUT_SZ)


# =============================================================================
# Parameter init (mirrors PyTorch module defaults) + pure-JAX reference.
# =============================================================================
def init_params(key):
    keys = jax.random.split(key, 16)
    p = {}

    # nn.Embedding: N(0, 1)
    p["emb_tables"] = [
        jax.random.normal(keys[i], (ni, nf), dtype=jnp.float32)
        for i, (ni, nf) in enumerate(EMB_SZS)
    ]

    def linear(kw, kb, fan_in, fan_out):
        bound = 1.0 / jnp.sqrt(jnp.float32(fan_in))
        w = jax.random.uniform(kw, (fan_in, fan_out), jnp.float32, -bound, bound)
        b = jax.random.uniform(kb, (1, fan_out), jnp.float32, -bound, bound)
        return w, b

    # BatchNorm1d defaults: gamma=1, beta=0, running_mean=0, running_var=1
    def bn(n):
        return (jnp.ones((1, n), jnp.float32), jnp.zeros((1, n), jnp.float32),
                jnp.zeros((1, n), jnp.float32), jnp.ones((1, n), jnp.float32))

    p["bnc_g"], p["bnc_b"], p["bnc_m"], p["bnc_v"] = bn(N_CONT)

    p["w1"], p["b1"] = linear(keys[4], keys[5], N_IN, LAYERS[0])
    p["bn1_g"], p["bn1_b"], p["bn1_m"], p["bn1_v"] = bn(LAYERS[0])

    p["w2"], p["b2"] = linear(keys[6], keys[7], LAYERS[0], LAYERS[1])
    p["bn2_g"], p["bn2_b"], p["bn2_m"], p["bn2_v"] = bn(LAYERS[1])

    p["w3"], p["b3"] = linear(keys[8], keys[9], LAYERS[1], OUT_SZ)
    return p


def _bn_ref(x, gamma, beta, mean, var):
    return (x - mean) * jax.lax.rsqrt(var + EPS) * gamma + beta


def reference_forward(x_cat, x_cont, params):
    """Pure-JAX reference with the ORIGINAL (unfolded) eval-mode formulation."""
    embs = [params["emb_tables"][i][x_cat[:, i]] for i in range(len(EMB_SZS))]
    x_emb = jnp.concatenate(embs, axis=1).astype(jnp.float32)
    xc = _bn_ref(x_cont, params["bnc_g"], params["bnc_b"],
                 params["bnc_m"], params["bnc_v"])
    x = jnp.concatenate([x_emb, xc], axis=1)
    h = x @ params["w1"] + params["b1"]
    h = jnp.maximum(h, 0.0)
    h = _bn_ref(h, params["bn1_g"], params["bn1_b"],
                params["bn1_m"], params["bn1_v"])
    h = jnp.maximum(h @ params["w2"] + params["b2"], 0.0)
    h = _bn_ref(h, params["bn2_g"], params["bn2_b"],
                params["bn2_m"], params["bn2_v"])
    return h @ params["w3"] + params["b3"]


if __name__ == "__main__":
    key = jax.random.PRNGKey(0)
    k_param, k_cat, k_cont = jax.random.split(key, 3)

    B = 300                     # exercises a 2-step grid + ragged-tail padding
    params = init_params(k_param)

    kc = jax.random.split(k_cat, 3)
    x_cat = jnp.stack(
        [jax.random.randint(kc[i], (B,), 0, CAT_SIZES[i], dtype=jnp.int32)
         for i in range(3)],
        axis=1,
    )
    x_cont = jax.random.normal(k_cont, (B, N_CONT), dtype=jnp.float32)

    out = tabular_forward(x_cat, x_cont, params)
    out = jax.block_until_ready(out)

    ref = reference_forward(x_cat, x_cont, params)
    assert out.shape == (B, OUT_SZ)
    assert jnp.allclose(out, ref, atol=1e-4, rtol=1e-4), (
        f"max abs err {jnp.max(jnp.abs(out - ref))}")
    print("KERNEL_OK")
</pallas_src>

<mosaic_0001>
module attributes {stable_mosaic.version = 11 : i64} {
  func.func @tabular_kernel(%arg0: i32, %arg1: memref<256x3xi32, #tpu.memory_space<vmem>>, %arg2: memref<256x6xf32, #tpu.memory_space<vmem>>, %arg3: memref<128x128xf32, #tpu.memory_space<vmem>>, %arg4: memref<128x256xf32, #tpu.memory_space<vmem>>, %arg5: memref<6x256xf32, #tpu.memory_space<vmem>>, %arg6: memref<1x256xf32, #tpu.memory_space<vmem>>, %arg7: memref<256x128xf32, #tpu.memory_space<vmem>>, %arg8: memref<1x128xf32, #tpu.memory_space<vmem>>, %arg9: memref<8x128xf32, #tpu.memory_space<vmem>>, %arg10: memref<1xf32, #tpu.memory_space<smem>>, %arg11: memref<1x256xf32, #tpu.memory_space<vmem>>) attributes {dimension_semantics = [#tpu.dimension_semantics<parallel>], iteration_bounds = array<i64: 2>, scalar_prefetch = 0 : i64, scratch_operands = 0 : i64, tpu.core_type = #tpu.core_type<tc>, window_params = [{transform_indices = @transform_0, window_bounds = array<i64: 256, 3>}, {transform_indices = @transform_1, window_bounds = array<i64: 256, 6>}, {pipeline_mode = #tpu.pipeline_mode<synchronous>, transform_indices = @transform_2, window_bounds = array<i64: 128, 128>}, {pipeline_mode = #tpu.pipeline_mode<synchronous>, transform_indices = @transform_3, window_bounds = array<i64: 128, 256>}, {pipeline_mode = #tpu.pipeline_mode<synchronous>, transform_indices = @transform_4, window_bounds = array<i64: 6, 256>}, {pipeline_mode = #tpu.pipeline_mode<synchronous>, transform_indices = @transform_5, window_bounds = array<i64: 1, 256>}, {pipeline_mode = #tpu.pipeline_mode<synchronous>, transform_indices = @transform_6, window_bounds = array<i64: 256, 128>}, {pipeline_mode = #tpu.pipeline_mode<synchronous>, transform_indices = @transform_7, window_bounds = array<i64: 1, 128>}, {pipeline_mode = #tpu.pipeline_mode<synchronous>, transform_indices = @transform_8, window_bounds = array<i64: 8, 128>}, {transform_indices = @transform_9, window_bounds = array<i64: 1>}, {transform_indices = @transform_10, window_bounds = array<i64: 1, 256>}]} {
    %c0 = arith.constant 0 : index
    %c0_0 = arith.constant 0 : index
    %0 = vector.load %arg1[%c0, %c0_0] : memref<256x3xi32, #tpu.memory_space<vmem>>, vector<256x3xi32>
    %1 = tpu.iota {dimensions = array<i32: 1>} : vector<256x128xi32>
    %2 = vector.extract_strided_slice %0 {offsets = [0, 0], sizes = [256, 1], strides = [1, 1]} : vector<256x3xi32> to vector<256x1xi32>
    %c0_i32 = arith.constant 0 : i32
    %3 = vector.broadcast %c0_i32 : i32 to vector<256x1xi32>
    %4 = arith.addi %2, %3 : vector<256x1xi32>
    %5 = vector.broadcast %4 : vector<256x1xi32> to vector<256x128xi32>
    %6 = arith.cmpi eq, %1, %5 : vector<256x128xi32>
    %7 = vector.extract_strided_slice %0 {offsets = [0, 1], sizes = [256, 1], strides = [1, 1]} : vector<256x3xi32> to vector<256x1xi32>
    %c24_i32 = arith.constant 24 : i32
    %8 = vector.broadcast %c24_i32 : i32 to vector<256x1xi32>
    %9 = arith.addi %7, %8 : vector<256x1xi32>
    %10 = vector.broadcast %9 : vector<256x1xi32> to vector<256x128xi32>
    %11 = arith.cmpi eq, %1, %10 : vector<256x128xi32>
    %12 = arith.ori %6, %11 : vector<256x128xi1>
    %13 = vector.extract_strided_slice %0 {offsets = [0, 2], sizes = [256, 1], strides = [1, 1]} : vector<256x3xi32> to vector<256x1xi32>
    %c26_i32 = arith.constant 26 : i32
    %14 = vector.broadcast %c26_i32 : i32 to vector<256x1xi32>
    %15 = arith.addi %13, %14 : vector<256x1xi32>
    %16 = vector.broadcast %15 : vector<256x1xi32> to vector<256x128xi32>
    %17 = arith.cmpi eq, %1, %16 : vector<256x128xi32>
    %18 = arith.ori %12, %17 : vector<256x128xi1>
    %19 = arith.extui %18 : vector<256x128xi1> to vector<256x128xi32>
    %20 = arith.sitofp %19 : vector<256x128xi32> to vector<256x128xf32>
    %c0_1 = arith.constant 0 : index
    %c0_2 = arith.constant 0 : index
    %21 = vector.load %arg3[%c0_1, %c0_2] : memref<128x128xf32, #tpu.memory_space<vmem>>, vector<128x128xf32>
    %cst = arith.constant dense<0.000000e+00> : vector<256x128xf32>
    %22 = tpu.matmul %20, %21, %cst {dimension_numbers = #tpu.dot_dimension_numbers<[1], [0], [0], [1], [0, 0, 1, 1], [], []>} : vector<256x128xf32>, vector<128x128xf32>, vector<256x128xf32> -> vector<256x128xf32>
    %c0_3 = arith.constant 0 : index
    %c0_4 = arith.constant 0 : index
    %23 = vector.load %arg4[%c0_3, %c0_4] : memref<128x256xf32, #tpu.memory_space<vmem>>, vector<128x256xf32>
    %cst_5 = arith.constant dense<0.000000e+00> : vector<256x256xf32>
    %24 = tpu.matmul %22, %23, %cst_5 {dimension_numbers = #tpu.dot_dimension_numbers<[1], [0], [0], [1], [0, 0, 1, 1], [], []>} : vector<256x128xf32>, vector<128x256xf32>, vector<256x256xf32> -> vector<256x256xf32>
    %c0_6 = arith.constant 0 : index
    %c0_7 = arith.constant 0 : index
    %25 = vector.load %arg2[%c0_6, %c0_7] : memref<256x6xf32, #tpu.memory_space<vmem>>, vector<256x6xf32>
    %c0_8 = arith.constant 0 : index
    %c0_9 = arith.constant 0 : index
    %26 = vector.load %arg5[%c0_8, %c0_9] : memref<6x256xf32, #tpu.memory_space<vmem>>, vector<6x256xf32>
    %cst_10 = arith.constant dense<0.000000e+00> : vector<256x256xf32>
    %27 = tpu.matmul %25, %26, %cst_10 {dimension_numbers = #tpu.dot_dimension_numbers<[1], [0], [0], [1], [0, 0, 1, 1], [], []>} : vector<256x6xf32>, vector<6x256xf32>, vector<256x256xf32> -> vector<256x256xf32>
    %28 = arith.addf %24, %27 : vector<256x256xf32>
    %c0_11 = arith.constant 0 : index
    %c0_12 = arith.constant 0 : index
    %29 = vector.load %arg6[%c0_11, %c0_12] : memref<1x256xf32, #tpu.memory_space<vmem>>, vector<1x256xf32>
    %30 = vector.broadcast %29 : vector<1x256xf32> to vector<256x256xf32>
    %31 = arith.addf %28, %30 : vector<256x256xf32>
    %cst_13 = arith.constant 0.000000e+00 : f32
    %32 = vector.broadcast %cst_13 : f32 to vector<256x256xf32>
    %33 = arith.maximumf %31, %32 : vector<256x256xf32>
    %c0_14 = arith.constant 0 : index
    %c0_15 = arith.constant 0 : index
    %34 = vector.load %arg7[%c0_14, %c0_15] : memref<256x128xf32, #tpu.memory_space<vmem>>, vector<256x128xf32>
    %cst_16 = arith.constant dense<0.000000e+00> : vector<256x128xf32>
    %35 = tpu.matmul %33, %34, %cst_16 {dimension_numbers = #tpu.dot_dimension_numbers<[1], [0], [0], [1], [0, 0, 1, 1], [], []>} : vector<256x256xf32>, vector<256x128xf32>, vector<256x128xf32> -> vector<256x128xf32>
    %c0_17 = arith.constant 0 : index
    %c0_18 = arith.constant 0 : index
    %36 = vector.load %arg8[%c0_17, %c0_18] : memref<1x128xf32, #tpu.memory_space<vmem>>, vector<1x128xf32>
    %37 = vector.broadcast %36 : vector<1x128xf32> to vector<256x128xf32>
    %38 = arith.addf %35, %37 : vector<256x128xf32>
    %cst_19 = arith.constant 0.000000e+00 : f32
    %39 = vector.broadcast %cst_19 : f32 to vector<256x128xf32>
    %40 = arith.maximumf %38, %39 : vector<256x128xf32>
    %c0_20 = arith.constant 0 : index
    %c0_21 = arith.constant 0 : index
    %41 = vector.load %arg9[%c0_20, %c0_21] : memref<8x128xf32, #tpu.memory_space<vmem>>, vector<8x128xf32>
    %42 = tpu.transpose %40, [1, 0] : vector<256x128xf32> -> vector<128x256xf32>
    %cst_22 = arith.constant dense<0.000000e+00> : vector<8x256xf32>
    %43 = tpu.matmul %41, %42, %cst_22 {dimension_numbers = #tpu.dot_dimension_numbers<[1], [0], [0], [1], [0, 0, 1, 1], [], []>} : vector<8x128xf32>, vector<128x256xf32>, vector<8x256xf32> -> vector<8x256xf32>
    %44 = vector.extract_strided_slice %43 {offsets = [0, 0], sizes = [1, 256], strides = [1, 1]} : vector<8x256xf32> to vector<1x256xf32>
    %c0_23 = arith.constant 0 : index
    %45 = memref.load %arg10[%c0_23] : memref<1xf32, #tpu.memory_space<smem>>
    %46 = vector.broadcast %45 : f32 to vector<1x256xf32>
    %47 = arith.addf %44, %46 : vector<1x256xf32>
    %c0_24 = arith.constant 0 : index
    %c0_25 = arith.constant 0 : index
    %48 = vector.load %arg11[%c0_24, %c0_25] : memref<1x256xf32, #tpu.memory_space<vmem>>, vector<1x256xf32>
    tpu.vector_store %arg11[%c0_24, %c0_25], %47 {strides = array<i32>} : memref<1x256xf32, #tpu.memory_space<vmem>>, vector<1x256xf32>,
    return
  }
  func.func @transform_0(%arg0: i32) -> (i32, i32) {
    %c0_i32 = arith.constant 0 : i32
    %c0_i32_0 = arith.constant 0 : i32
    return %arg0, %c0_i32 : i32, i32
  }
  func.func @transform_1(%arg0: i32) -> (i32, i32) {
    %c0_i32 = arith.constant 0 : i32
    %c0_i32_0 = arith.constant 0 : i32
    return %arg0, %c0_i32 : i32, i32
  }
  func.func @transform_2(%arg0: i32) -> (i32, i32) {
    %c0_i32 = arith.constant 0 : i32
    %c0_i32_0 = arith.constant 0 : i32
    %c0_i32_1 = arith.constant 0 : i32
    return %c0_i32, %c0_i32_0 : i32, i32
  }
  func.func @transform_3(%arg0: i32) -> (i32, i32) {
    %c0_i32 = arith.constant 0 : i32
    %c0_i32_0 = arith.constant 0 : i32
    %c0_i32_1 = arith.constant 0 : i32
    return %c0_i32, %c0_i32_0 : i32, i32
  }
  func.func @transform_4(%arg0: i32) -> (i32, i32) {
    %c0_i32 = arith.constant 0 : i32
    %c0_i32_0 = arith.constant 0 : i32
    %c0_i32_1 = arith.constant 0 : i32
    return %c0_i32, %c0_i32_0 : i32, i32
  }
  func.func @transform_5(%arg0: i32) -> (i32, i32) {
    %c0_i32 = arith.constant 0 : i32
    %c0_i32_0 = arith.constant 0 : i32
    %c0_i32_1 = arith.constant 0 : i32
    return %c0_i32, %c0_i32_0 : i32, i32
  }
  func.func @transform_6(%arg0: i32) -> (i32, i32) {
    %c0_i32 = arith.constant 0 : i32
    %c0_i32_0 = arith.constant 0 : i32
    %c0_i32_1 = arith.constant 0 : i32
    return %c0_i32, %c0_i32_0 : i32, i32
  }
  func.func @transform_7(%arg0: i32) -> (i32, i32) {
    %c0_i32 = arith.constant 0 : i32
    %c0_i32_0 = arith.constant 0 : i32
    %c0_i32_1 = arith.constant 0 : i32
    return %c0_i32, %c0_i32_0 : i32, i32
  }
  func.func @transform_8(%arg0: i32) -> (i32, i32) {
    %c0_i32 = arith.constant 0 : i32
    %c0_i32_0 = arith.constant 0 : i32
    %c0_i32_1 = arith.constant 0 : i32
    return %c0_i32, %c0_i32_0 : i32, i32
  }
  func.func @transform_9(%arg0: i32) -> i32 {
    %c0_i32 = arith.constant 0 : i32
    %c0_i32_0 = arith.constant 0 : i32
    return %c0_i32 : i32
  }
  func.func @transform_10(%arg0: i32) -> (i32, i32) {
    %c0_i32 = arith.constant 0 : i32
    %c0_i32_0 = arith.constant 0 : i32
    return %c0_i32, %arg0 : i32, i32
  }
}

</mosaic_0001>

<llo_original>
// kernel: tpu_custom_call.1
$region0: #{tpu_custom_call.1}
  #allocation0 [shape = 'u32[]', space=smem, size = 0x4, offset = 0x4, fixed_abs, tag = 'smem constant byte address 0x4 - core index']
  #allocation1 [shape = 'u32[144,128]{1,0:T(1,128)}', space=vmem, size = 0x12000, scoped, tag = 'internal scratch']
  #allocation2 [shape = 'f32[1]{0:T(128)S(6)}', space=smem, size = 0x200, scoped, tag = 'scoped memory for tpu_custom_call.1']
  %s0 = inlined_call_operand.vmem [shape: s32[512,3], index: 0, kind: input, shape index: {}]
  %s1 = inlined_call_operand.vmem [shape: f32[512,6], index: 1, kind: input, shape index: {}]
  %s2 = inlined_call_operand.vmem [shape: f32[128,128], index: 2, kind: input, shape index: {}]
  %s3 = inlined_call_operand.vmem [shape: f32[128,256], index: 3, kind: input, shape index: {}]
  %s4 = inlined_call_operand.vmem [shape: f32[6,256], index: 4, kind: input, shape index: {}]
  %s5 = inlined_call_operand.vmem [shape: f32[1,256], index: 5, kind: input, shape index: {}]
  %s6 = inlined_call_operand.vmem [shape: f32[256,128], index: 6, kind: input, shape index: {}]
  %s7 = inlined_call_operand.vmem [shape: f32[1,128], index: 7, kind: input, shape index: {}]
  %s8 = inlined_call_operand.vmem [shape: f32[8,128], index: 8, kind: input, shape index: {}]
  %s9 = inlined_call_operand.<no memory space> [shape: f32[1], index: 9, kind: input, shape index: {}]
  %s10 = inlined_call_operand.hbm [shape: f32[1,512], index: 10, kind: output, shape index: {}]
  %s11 = sld [smem:[#allocation0]]
  $region73: #{tpu_custom_call.1} parent=0
    _
  %s13 = ssub.s32 1, %s11
  %s14 = scalar_select 0, %s13, %s11
  %15 = sst [smem:[#allocation2]] %s9
  $region1: #{tpu_custom_call.1} parent=0
    #allocation3 [shape = 'u8[2048]{0}', space=vmem, size = 0x800, scoped, tag = 'output window, operand 0']
    #allocation4 [shape = 's32[2]{0}', space=sflag, size = 0x8, scoped, tag = 'scoped memory for tpu_custom_call.1']
    %16 = vsyncpa [#allocation4], 0
    %s17 = scalar_lea.sflag [#allocation4], 1
    %18 = vsyncpa %s17, 0
    loop: start=0, step=1, limit=4
    $region2: #{tpu_custom_call.1} parent=1 // loop_pre_header
      _
    $region3: #{tpu_custom_call.1} parent=1 // loop_header
      %s20 = sphi 0, %s24
      %p21 = scmp.ge.s32.totalorder %s20, 4
      %s30 = sphi 0, %s32
      %s33 = sphi 0, %s30
      %s34 = sphi 0, %s33
      %s50 = sphi 0, %s34
      %s56 = sphi 0, %s58
      %s59 = sphi 0, %s56
      %s60 = sphi 0, %s59
      %s76 = sphi 0, %s60
      %s80 = sphi 0, %s80
      %s82 = sphi 0, %s80
      %s83 = sphi 0, %s82
      %s97 = sphi 0, %s83
      %s101 = sphi 0, %s101
      %s103 = sphi 0, %s101
      %s104 = sphi 0, %s103
      %s118 = sphi 0, %s104
      %s122 = sphi 0, %s122
      %s124 = sphi 0, %s122
      %s125 = sphi 0, %s124
      %s139 = sphi 0, %s125
      %s143 = sphi 0, %s143
      %s145 = sphi 0, %s143
      %s146 = sphi 0, %s145
      %s160 = sphi 0, %s146
      %s164 = sphi 0, %s164
      %s166 = sphi 0, %s164
      %s167 = sphi 0, %s166
      %s181 = sphi 0, %s167
      %s185 = sphi 0, %s185
      %s187 = sphi 0, %s185
      %s188 = sphi 0, %s187
      %s202 = sphi 0, %s188
      %s206 = sphi 0, %s206
      %s208 = sphi 0, %s206
      %s209 = sphi 0, %s208
      %s223 = sphi 0, %s209
      %s227 = sphi 0, %s227
      %s229 = sphi 0, %s227
      %s230 = sphi 0, %s229
      %s244 = sphi 0, %s230
      %s250 = sphi 0, %s252
      %s253 = sphi 0, %s250
      %s254 = sphi 0, %s253
      %s270 = sphi 0, %s254
    $region4: #{tpu_custom_call.1} parent=1 // loop_header_branch
      %23 = sbr.rel (%p21) target = $region8
    $region5: #{tpu_custom_call.1} parent=1 // loop_body
      %s25 = ssub.s32 %s20, 1
      %s26 = ssub.s32 %s20, 2
      %s27 = sadd.s32 %s20, 1
      %s28 = ssub.s32 %s20, %s27
      %p29 = scmp.eq.s32.totalorder %s28, 0
      %s31 = sadd.s32 %s30, 1
      %s32 = scalar_select %p29, %s30, %s31
      %p35 = pneg %p29
      %p36 = scmp.eq.s32.totalorder %s20, 1
      %p37 = por %p35, %p36
      %p38 = scmp.ne.s32.totalorder %s30, %s33
      %p39 = scmp.eq.s32.totalorder %s20, 0
      %p40 = por %p38, %p39
      %p41 = scmp.ne.s32.totalorder %s30, %s33
      %p42 = scmp.eq.s32.totalorder %s25, 1
      %p43 = por %p41, %p42
      %p44 = scmp.ne.s32.totalorder %s33, %s34
      %p45 = scmp.eq.s32.totalorder %s25, 0
      %p46 = por %p44, %p45
      %p47 = scmp.ne.s32.totalorder %s33, %s34
      %p48 = scmp.eq.s32.totalorder %s26, 1
      %p49 = por %p47, %p48
      %p51 = scmp.ne.s32.totalorder %s34, %s50
      %p52 = scmp.eq.s32.totalorder %s26, 0
      %p53 = por %p51, %p52
      %s54 = ssub.s32 %s20, %s27
      %p55 = scmp.eq.s32.totalorder %s54, 0
      %s57 = sadd.s32 %s56, 1
      %s58 = scalar_select %p55, %s56, %s57
      %p61 = pneg %p55
      %p62 = scmp.eq.s32.totalorder %s20, 1
      %p63 = por %p61, %p62
      %p64 = scmp.ne.s32.totalorder %s56, %s59
      %p65 = scmp.eq.s32.totalorder %s20, 0
      %p66 = por %p64, %p65
      %p67 = scmp.ne.s32.totalorder %s56, %s59
      %p68 = scmp.eq.s32.totalorder %s25, 1
      %p69 = por %p67, %p68
      %p70 = scmp.ne.s32.totalorder %s59, %s60
      %p71 = scmp.eq.s32.totalorder %s25, 0
      %p72 = por %p70, %p71
      %p73 = scmp.ne.s32.totalorder %s59, %s60
      %p74 = scmp.eq.s32.totalorder %s26, 1
      %p75 = por %p73, %p74
      %p77 = scmp.ne.s32.totalorder %s60, %s76
      %p78 = scmp.eq.s32.totalorder %s26, 0
      %p79 = por %p77, %p78
      %s81 = sadd.s32 %s80, 1
      %p84 = scmp.eq.s32.totalorder %s20, 1
      %p85 = scmp.ne.s32.totalorder %s80, %s82
      %p86 = scmp.eq.s32.totalorder %s20, 0
      %p87 = por %p85, %p86
      %p88 = scmp.ne.s32.totalorder %s80, %s82
      %p89 = scmp.eq.s32.totalorder %s25, 1
      %p90 = por %p88, %p89
      %p91 = scmp.ne.s32.totalorder %s82, %s83
      %p92 = scmp.eq.s32.totalorder %s25, 0
      %p93 = por %p91, %p92
      %p94 = scmp.ne.s32.totalorder %s82, %s83
      %p95 = scmp.eq.s32.totalorder %s26, 1
      %p96 = por %p94, %p95
      %p98 = scmp.ne.s32.totalorder %s83, %s97
      %p99 = scmp.eq.s32.totalorder %s26, 0
      %p100 = por %p98, %p99
      %s102 = sadd.s32 %s101, 1
      %p105 = scmp.eq.s32.totalorder %s20, 1
      %p106 = scmp.ne.s32.totalorder %s101, %s103
      %p107 = scmp.eq.s32.totalorder %s20, 0
      %p108 = por %p106, %p107
      %p109 = scmp.ne.s32.totalorder %s101, %s103
      %p110 = scmp.eq.s32.totalorder %s25, 1
      %p111 = por %p109, %p110
      %p112 = scmp.ne.s32.totalorder %s103, %s104
      %p113 = scmp.eq.s32.totalorder %s25, 0
      %p114 = por %p112, %p113
      %p115 = scmp.ne.s32.totalorder %s103, %s104
      %p116 = scmp.eq.s32.totalorder %s26, 1
      %p117 = por %p115, %p116
      %p119 = scmp.ne.s32.totalorder %s104, %s118
      %p120 = scmp.eq.s32.totalorder %s26, 0
      %p121 = por %p119, %p120
      %s123 = sadd.s32 %s122, 1
      %p126 = scmp.eq.s32.totalorder %s20, 1
      %p127 = scmp.ne.s32.totalorder %s122, %s124
      %p128 = scmp.eq.s32.totalorder %s20, 0
      %p129 = por %p127, %p128
      %p130 = scmp.ne.s32.totalorder %s122, %s124
      %p131 = scmp.eq.s32.totalorder %s25, 1
      %p132 = por %p130, %p131
      %p133 = scmp.ne.s32.totalorder %s124, %s125
      %p134 = scmp.eq.s32.totalorder %s25, 0
      %p135 = por %p133, %p134
      %p136 = scmp.ne.s32.totalorder %s124, %s125
      %p137 = scmp.eq.s32.totalorder %s26, 1
      %p138 = por %p136, %p137
      %p140 = scmp.ne.s32.totalorder %s125, %s139
      %p141 = scmp.eq.s32.totalorder %s26, 0
      %p142 = por %p140, %p141
      %s144 = sadd.s32 %s143, 1
      %p147 = scmp.eq.s32.totalorder %s20, 1
      %p148 = scmp.ne.s32.totalorder %s143, %s145
      %p149 = scmp.eq.s32.totalorder %s20, 0
      %p150 = por %p148, %p149
      %p151 = scmp.ne.s32.totalorder %s143, %s145
      %p152 = scmp.eq.s32.totalorder %s25, 1
      %p153 = por %p151, %p152
      %p154 = scmp.ne.s32.totalorder %s145, %s146
      %p155 = scmp.eq.s32.totalorder %s25, 0
      %p156 = por %p154, %p155
      %p157 = scmp.ne.s32.totalorder %s145, %s146
      %p158 = scmp.eq.s32.totalorder %s26, 1
      %p159 = por %p157, %p158
      %p161 = scmp.ne.s32.totalorder %s146, %s160
      %p162 = scmp.eq.s32.totalorder %s26, 0
      %p163 = por %p161, %p162
      %s165 = sadd.s32 %s164, 1
      %p168 = scmp.eq.s32.totalorder %s20, 1
      %p169 = scmp.ne.s32.totalorder %s164, %s166
      %p170 = scmp.eq.s32.totalorder %s20, 0
      %p171 = por %p169, %p170
      %p172 = scmp.ne.s32.totalorder %s164, %s166
      %p173 = scmp.eq.s32.totalorder %s25, 1
      %p174 = por %p172, %p173
      %p175 = scmp.ne.s32.totalorder %s166, %s167
      %p176 = scmp.eq.s32.totalorder %s25, 0
      %p177 = por %p175, %p176
      %p178 = scmp.ne.s32.totalorder %s166, %s167
      %p179 = scmp.eq.s32.totalorder %s26, 1
      %p180 = por %p178, %p179
      %p182 = scmp.ne.s32.totalorder %s167, %s181
      %p183 = scmp.eq.s32.totalorder %s26, 0
      %p184 = por %p182, %p183
      %s186 = sadd.s32 %s185, 1
      %p189 = scmp.eq.s32.totalorder %s20, 1
      %p190 = scmp.ne.s32.totalorder %s185, %s187
      %p191 = scmp.eq.s32.totalorder %s20, 0
      %p192 = por %p190, %p191
      %p193 = scmp.ne.s32.totalorder %s185, %s187
      %p194 = scmp.eq.s32.totalorder %s25, 1
      %p195 = por %p193, %p194
      %p196 = scmp.ne.s32.totalorder %s187, %s188
      %p197 = scmp.eq.s32.totalorder %s25, 0
      %p198 = por %p196, %p197
      %p199 = scmp.ne.s32.totalorder %s187, %s188
      %p200 = scmp.eq.s32.totalorder %s26, 1
      %p201 = por %p199, %p200
      %p203 = scmp.ne.s32.totalorder %s188, %s202
      %p204 = scmp.eq.s32.totalorder %s26, 0
      %p205 = por %p203, %p204
      %s207 = sadd.s32 %s206, 1
      %p210 = scmp.eq.s32.totalorder %s20, 1
      %p211 = scmp.ne.s32.totalorder %s206, %s208
      %p212 = scmp.eq.s32.totalorder %s20, 0
      %p213 = por %p211, %p212
      %p214 = scmp.ne.s32.totalorder %s206, %s208
      %p215 = scmp.eq.s32.totalorder %s25, 1
      %p216 = por %p214, %p215
      %p217 = scmp.ne.s32.totalorder %s208, %s209
      %p218 = scmp.eq.s32.totalorder %s25, 0
      %p219 = por %p217, %p218
      %p220 = scmp.ne.s32.totalorder %s208, %s209
      %p221 = scmp.eq.s32.totalorder %s26, 1
      %p222 = por %p220, %p221
      %p224 = scmp.ne.s32.totalorder %s209, %s223
      %p225 = scmp.eq.s32.totalorder %s26, 0
      %p226 = por %p224, %p225
      %s228 = sadd.s32 %s227, 1
      %p231 = scmp.eq.s32.totalorder %s20, 1
      %p232 = scmp.ne.s32.totalorder %s227, %s229
      %p233 = scmp.eq.s32.totalorder %s20, 0
      %p234 = por %p232, %p233
      %p235 = scmp.ne.s32.totalorder %s227, %s229
      %p236 = scmp.eq.s32.totalorder %s25, 1
      %p237 = por %p235, %p236
      %p238 = scmp.ne.s32.totalorder %s229, %s230
      %p239 = scmp.eq.s32.totalorder %s25, 0
      %p240 = por %p238, %p239
      %p241 = scmp.ne.s32.totalorder %s229, %s230
      %p242 = scmp.eq.s32.totalorder %s26, 1
      %p243 = por %p241, %p242
      %p245 = scmp.ne.s32.totalorder %s230, %s244
      %p246 = scmp.eq.s32.totalorder %s26, 0
      %p247 = por %p245, %p246
      %s248 = ssub.s32 %s20, %s27
      %p249 = scmp.eq.s32.totalorder %s248, 0
      %s251 = sadd.s32 %s250, 1
      %s252 = scalar_select %p249, %s250, %s251
      %p255 = pneg %p249
      %p256 = scmp.eq.s32.totalorder %s20, 1
      %p257 = por %p255, %p256
      %p258 = scmp.ne.s32.totalorder %s250, %s253
      %p259 = scmp.eq.s32.totalorder %s20, 0
      %p260 = por %p258, %p259
      %p261 = scmp.ne.s32.totalorder %s250, %s253
      %p262 = scmp.eq.s32.totalorder %s25, 1
      %p263 = por %p261, %p262
      %p264 = scmp.ne.s32.totalorder %s253, %s254
      %p265 = scmp.eq.s32.totalorder %s25, 0
      %p266 = por %p264, %p265
      %p267 = scmp.ne.s32.totalorder %s253, %s254
      %p268 = scmp.eq.s32.totalorder %s26, 1
      %p269 = por %p267, %p268
      %p271 = scmp.ne.s32.totalorder %s254, %s270
      %p272 = scmp.eq.s32.totalorder %s26, 0
      %p273 = por %p271, %p272
      %p274 = scmp.le.s32.totalorder 1, %s20
      %p275 = scmp.lt.s32.totalorder %s20, 3
      %p276 = pnand %p274, %p275
      %p277 = pneg %p276
      // Predicated region
      $region9: #{tpu_custom_call.1} parent=5 // pred_check
        _
      $region10: #{tpu_custom_call.1} parent=5 // pred_check_branch
        %279 = sbr.rel (%p276) target = $region12
      $region11: #{tpu_custom_call.1} parent=5 // pred_region
        %s280 = ssub.s32 %s20, 1
        // Predicated region
        $region13: #{tpu_custom_call.1} parent=11 // pred_check
          %p281 = pneg %p93
        $region14: #{tpu_custom_call.1} parent=11 // pred_check_branch
          %283 = sbr.rel (%p281) target = $region16
        $region15: #{tpu_custom_call.1} parent=11 // pred_region
          _
        $region16: #{tpu_custom_call.1} parent=11 // pred_fallthru
          _
        // Predicated region
        $region17: #{tpu_custom_call.1} parent=11 // pred_check
          %p284 = pneg %p114
        $region18: #{tpu_custom_call.1} parent=11 // pred_check_branch
          %286 = sbr.rel (%p284) target = $region20
        $region19: #{tpu_custom_call.1} parent=11 // pred_region
          _
        $region20: #{tpu_custom_call.1} parent=11 // pred_fallthru
          _
        // Predicated region
        $region21: #{tpu_custom_call.1} parent=11 // pred_check
          %p287 = pneg %p135
        $region22: #{tpu_custom_call.1} parent=11 // pred_check_branch
          %289 = sbr.rel (%p287) target = $region24
        $region23: #{tpu_custom_call.1} parent=11 // pred_region
          _
        $region24: #{tpu_custom_call.1} parent=11 // pred_fallthru
          _
        // Predicated region
        $region25: #{tpu_custom_call.1} parent=11 // pred_check
          %p290 = pneg %p156
        $region26: #{tpu_custom_call.1} parent=11 // pred_check_branch
          %292 = sbr.rel (%p290) target = $region28
        $region27: #{tpu_custom_call.1} parent=11 // pred_region
          _
        $region28: #{tpu_custom_call.1} parent=11 // pred_fallthru
          _
        // Predicated region
        $region29: #{tpu_custom_call.1} parent=11 // pred_check
          %p293 = pneg %p177
        $region30: #{tpu_custom_call.1} parent=11 // pred_check_branch
          %295 = sbr.rel (%p293) target = $region32
        $region31: #{tpu_custom_call.1} parent=11 // pred_region
          _
        $region32: #{tpu_custom_call.1} parent=11 // pred_fallthru
          _
        // Predicated region
        $region33: #{tpu_custom_call.1} parent=11 // pred_check
          %p296 = pneg %p198
        $region34: #{tpu_custom_call.1} parent=11 // pred_check_branch
          %298 = sbr.rel (%p296) target = $region36
        $region35: #{tpu_custom_call.1} parent=11 // pred_region
          _
        $region36: #{tpu_custom_call.1} parent=11 // pred_fallthru
          _
        // Predicated region
        $region37: #{tpu_custom_call.1} parent=11 // pred_check
          %p299 = pneg %p219
        $region38: #{tpu_custom_call.1} parent=11 // pred_check_branch
          %301 = sbr.rel (%p299) target = $region40
        $region39: #{tpu_custom_call.1} parent=11 // pred_region
          _
        $region40: #{tpu_custom_call.1} parent=11 // pred_fallthru
          _
        // Predicated region
        $region41: #{tpu_custom_call.1} parent=11 // pred_check
          %p302 = pneg %p240
        $region42: #{tpu_custom_call.1} parent=11 // pred_check_branch
          %304 = sbr.rel (%p302) target = $region44
        $region43: #{tpu_custom_call.1} parent=11 // pred_region
          _
        $region44: #{tpu_custom_call.1} parent=11 // pred_fallthru
          _
      $region12: #{tpu_custom_call.1} parent=5 // pred_fallthru
        _
      %p305 = scmp.lt.s32.totalorder %s20, 2
      // Predicated region
      $region45: #{tpu_custom_call.1} parent=5 // pred_check
        %p306 = pneg %p305
      $region46: #{tpu_custom_call.1} parent=5 // pred_check_branch
        %308 = sbr.rel (%p306) target = $region48
      $region47: #{tpu_custom_call.1} parent=5 // pred_region
        // Predicated region
        $region49: #{tpu_custom_call.1} parent=47 // pred_check
          %p309 = pneg %p40
        $region50: #{tpu_custom_call.1} parent=47 // pred_check_branch
          %311 = sbr.rel (%p309) target = $region52
        $region51: #{tpu_custom_call.1} parent=47 // pred_region
          %s312 = smul.u32 32, %s20
          %p313 = scmp.lt.s32.totalorder %s312, 63
          %s314 = scalar_select %p313, %s312, 63
          %s315 = smul.addr %s314, 8
          %s316 = scalar_lea.vmem %s0, %s315
          %s317 = smul.u32 32, %s20
        $region52: #{tpu_custom_call.1} parent=47 // pred_fallthru
          _
        // Predicated region
        $region53: #{tpu_custom_call.1} parent=47 // pred_check
          %p318 = pneg %p66
        $region54: #{tpu_custom_call.1} parent=47 // pred_check_branch
          %320 = sbr.rel (%p318) target = $region56
        $region55: #{tpu_custom_call.1} parent=47 // pred_region
          %s321 = smul.u32 32, %s20
          %p322 = scmp.lt.s32.totalorder %s321, 63
          %s323 = scalar_select %p322, %s321, 63
          %s324 = smul.addr %s323, 8
          %s325 = scalar_lea.vmem %s1, %s324
          %s326 = smul.u32 32, %s20
        $region56: #{tpu_custom_call.1} parent=47 // pred_fallthru
          _
      $region48: #{tpu_custom_call.1} parent=5 // pred_fallthru
        _
      %p327 = scmp.le.s32.totalorder 1, %s20
      %p328 = scmp.lt.s32.totalorder %s20, 3
      %p329 = pnand %p327, %p328
      %p330 = pneg %p329
      // Predicated region
      $region57: #{tpu_custom_call.1} parent=5 // pred_check
        _
      $region58: #{tpu_custom_call.1} parent=5 // pred_check_branch
        %332 = sbr.rel (%p329) target = $region60
      $region59: #{tpu_custom_call.1} parent=5 // pred_region
        %s333 = ssub.s32 %s20, 1
        %s334 = smul.u32 32, %s25
        %p335 = scmp.lt.s32.totalorder %s334, 63
        %s336 = scalar_select %p335, %s334, 63
        %s337 = smul.addr %s336, 8
        %s338 = scalar_lea.vmem %s0, %s337
        %p339 = pneg %p46
        %p340 = pneg %p43
        %s341 = smul.u32 32, %s25
        %p342 = scmp.lt.s32.totalorder %s341, 63
        %s343 = scalar_select %p342, %s341, 63
        %s344 = smul.addr %s343, 8
        %s345 = scalar_lea.vmem %s1, %s344
        %p346 = pneg %p72
        %p347 = pneg %p69
        %p348 = pneg %p93
        %p349 = pneg %p90
        %p350 = pneg %p114
        %p351 = pneg %p111
        %p352 = pneg %p135
        %p353 = pneg %p132
        %p354 = pneg %p156
        %p355 = pneg %p153
        %p356 = pneg %p177
        %p357 = pneg %p174
        %p358 = pneg %p198
        %p359 = pneg %p195
        %p360 = pneg %p219
        %p361 = pneg %p216
        %p362 = pneg %p240
        %p363 = pneg %p237
        %p364 = pneg %p266
        %p365 = pneg %p263
        %s366 = sand.u32 %s253, 1
        %s367 = scalar_lea.sflag [#allocation4], %s366
        %s368 = sand.u32 %s253, 1
        %s369 = smul.addr %s368, 2
        %s370 = scalar_lea.vmem [#allocation3], %s369
        %s371 = smul.u32 32, %s25
        %p372 = scmp.lt.s32.totalorder %s371, 63
        %s373 = scalar_select %p372, %s371, 63
        %s374 = smul.addr %s373, 8
        %s375 = scalar_lea.vmem %s0, %s374
        %s376 = smul.u32 32, %s25
        %s377 = smul.u32 32, %s25
        %p378 = scmp.lt.s32.totalorder %s377, 63
        %s379 = scalar_select %p378, %s377, 63
        %s380 = smul.addr %s379, 8
        %s381 = scalar_lea.vmem %s1, %s380
        %s382 = smul.u32 32, %s25
        %s383 = smul.u32 2, %s25
        %v384 = vld [vmem:[%s375] sm:$0xff]
        %v385 = vld [vmem:[%s375 + $0x8] sm:$0xff]
        %v386 = vld [vmem:[%s375 + $0x10] sm:$0xff]
        %v387 = vld [vmem:[%s375 + $0x18] sm:$0xff]
        %v388 = vld [vmem:[%s375 + $0x20] sm:$0xff]
        %v389 = vld [vmem:[%s375 + $0x28] sm:$0xff]
        %v390 = vld [vmem:[%s375 + $0x30] sm:$0xff]
        %v391 = vld [vmem:[%s375 + $0x38] sm:$0xff]
        %v392 = vld [vmem:[%s375 + $0x40] sm:$0xff]
        %v393 = vld [vmem:[%s375 + $0x48] sm:$0xff]
        %v394 = vld [vmem:[%s375 + $0x50] sm:$0xff]
        %v395 = vld [vmem:[%s375 + $0x58] sm:$0xff]
        %v396 = vld [vmem:[%s375 + $0x60] sm:$0xff]
        %v397 = vld [vmem:[%s375 + $0x68] sm:$0xff]
        %v398 = vld [vmem:[%s375 + $0x70] sm:$0xff]
        %v399 = vld [vmem:[%s375 + $0x78] sm:$0xff]
        %v400 = vld [vmem:[%s375 + $0x80] sm:$0xff]
        %v401 = vld [vmem:[%s375 + $0x88] sm:$0xff]
        %v402 = vld [vmem:[%s375 + $0x90] sm:$0xff]
        %v403 = vld [vmem:[%s375 + $0x98] sm:$0xff]
        %v404 = vld [vmem:[%s375 + $0xa0] sm:$0xff]
        %v405 = vld [vmem:[%s375 + $0xa8] sm:$0xff]
        %v406 = vld [vmem:[%s375 + $0xb0] sm:$0xff]
        %v407 = vld [vmem:[%s375 + $0xb8] sm:$0xff]
        %v408 = vld [vmem:[%s375 + $0xc0] sm:$0xff]
        %v409 = vld [vmem:[%s375 + $0xc8] sm:$0xff]
        %v410 = vld [vmem:[%s375 + $0xd0] sm:$0xff]
        %v411 = vld [vmem:[%s375 + $0xd8] sm:$0xff]
        %v412 = vld [vmem:[%s375 + $0xe0] sm:$0xff]
        %v413 = vld [vmem:[%s375 + $0xe8] sm:$0xff]
        %v414 = vld [vmem:[%s375 + $0xf0] sm:$0xff]
        %v415 = vld [vmem:[%s375 + $0xf8] sm:$0xff]
        %v416 = vlaneseq
        %v417 = vand.u32 %v416, 127
        %418 = vset.pattern.permute.xlu0 0
        %419 = vperm.xlu0 %418, %v384
        %v420 = vpop.permute.xlu0 %419
        %421 = vset.pattern.permute.xlu0 0
        %422 = vperm.xlu0 %421, %v385
        %v423 = vpop.permute.xlu0 %422
        %424 = vset.pattern.permute.xlu0 0
        %425 = vperm.xlu0 %424, %v386
        %v426 = vpop.permute.xlu0 %425
        %427 = vset.pattern.permute.xlu0 0
        %428 = vperm.xlu0 %427, %v387
        %v429 = vpop.permute.xlu0 %428
        %430 = vset.pattern.permute.xlu0 0
        %431 = vperm.xlu0 %430, %v388
        %v432 = vpop.permute.xlu0 %431
        %433 = vset.pattern.permute.xlu0 0
        %434 = vperm.xlu0 %433, %v389
        %v435 = vpop.permute.xlu0 %434
        %436 = vset.pattern.permute.xlu0 0
        %437 = vperm.xlu0 %436, %v390
        %v438 = vpop.permute.xlu0 %437
        %439 = vset.pattern.permute.xlu0 0
        %440 = vperm.xlu0 %439, %v391
        %v441 = vpop.permute.xlu0 %440
        %442 = vset.pattern.permute.xlu0 0
        %443 = vperm.xlu0 %442, %v392
        %v444 = vpop.permute.xlu0 %443
        %445 = vset.pattern.permute.xlu0 0
        %446 = vperm.xlu0 %445, %v393
        %v447 = vpop.permute.xlu0 %446
        %448 = vset.pattern.permute.xlu0 0
        %449 = vperm.xlu0 %448, %v394
        %v450 = vpop.permute.xlu0 %449
        %451 = vset.pattern.permute.xlu0 0
        %452 = vperm.xlu0 %451, %v395
        %v453 = vpop.permute.xlu0 %452
        %454 = vset.pattern.permute.xlu0 0
        %455 = vperm.xlu0 %454, %v396
        %v456 = vpop.permute.xlu0 %455
        %457 = vset.pattern.permute.xlu0 0
        %458 = vperm.xlu0 %457, %v397
        %v459 = vpop.permute.xlu0 %458
        %460 = vset.pattern.permute.xlu0 0
        %461 = vperm.xlu0 %460, %v398
        %v462 = vpop.permute.xlu0 %461
        %463 = vset.pattern.permute.xlu0 0
        %464 = vperm.xlu0 %463, %v399
        %v465 = vpop.permute.xlu0 %464
        %466 = vset.pattern.permute.xlu0 0
        %467 = vperm.xlu0 %466, %v400
        %v468 = vpop.permute.xlu0 %467
        %469 = vset.pattern.permute.xlu0 0
        %470 = vperm.xlu0 %469, %v401
        %v471 = vpop.permute.xlu0 %470
        %472 = vset.pattern.permute.xlu0 0
        %473 = vperm.xlu0 %472, %v402
        %v474 = vpop.permute.xlu0 %473
        %475 = vset.pattern.permute.xlu0 0
        %476 = vperm.xlu0 %475, %v403
        %v477 = vpop.permute.xlu0 %476
        %478 = vset.pattern.permute.xlu0 0
        %479 = vperm.xlu0 %478, %v404
        %v480 = vpop.permute.xlu0 %479
        %481 = vset.pattern.permute.xlu0 0
        %482 = vperm.xlu0 %481, %v405
        %v483 = vpop.permute.xlu0 %482
        %484 = vset.pattern.permute.xlu0 0
        %485 = vperm.xlu0 %484, %v406
        %v486 = vpop.permute.xlu0 %485
        %487 = vset.pattern.permute.xlu0 0
        %488 = vperm.xlu0 %487, %v407
        %v489 = vpop.permute.xlu0 %488
        %490 = vset.pattern.permute.xlu0 0
        %491 = vperm.xlu0 %490, %v408
        %v492 = vpop.permute.xlu0 %491
        %493 = vset.pattern.permute.xlu0 0
        %494 = vperm.xlu0 %493, %v409
        %v495 = vpop.permute.xlu0 %494
        %496 = vset.pattern.permute.xlu0 0
        %497 = vperm.xlu0 %496, %v410
        %v498 = vpop.permute.xlu0 %497
        %499 = vset.pattern.permute.xlu0 0
        %500 = vperm.xlu0 %499, %v411
        %v501 = vpop.permute.xlu0 %500
        %502 = vset.pattern.permute.xlu0 0
        %503 = vperm.xlu0 %502, %v412
        %v504 = vpop.permute.xlu0 %503
        %505 = vset.pattern.permute.xlu0 0
        %506 = vperm.xlu0 %505, %v413
        %v507 = vpop.permute.xlu0 %506
        %508 = vset.pattern.permute.xlu0 0
        %509 = vperm.xlu0 %508, %v414
        %v510 = vpop.permute.xlu0 %509
        %511 = vset.pattern.permute.xlu0 0
        %512 = vperm.xlu0 %511, %v415
        %v513 = vpop.permute.xlu0 %512
        %vm514 = vcmp.eq.s32.totalorder %v417, %v420
        %vm515 = vcmp.eq.s32.totalorder %v417, %v423
        %vm516 = vcmp.eq.s32.totalorder %v417, %v426
        %vm517 = vcmp.eq.s32.totalorder %v417, %v429
        %vm518 = vcmp.eq.s32.totalorder %v417, %v432
        %vm519 = vcmp.eq.s32.totalorder %v417, %v435
        %vm520 = vcmp.eq.s32.totalorder %v417, %v438
        %vm521 = vcmp.eq.s32.totalorder %v417, %v441
        %vm522 = vcmp.eq.s32.totalorder %v417, %v444
        %vm523 = vcmp.eq.s32.totalorder %v417, %v447
        %vm524 = vcmp.eq.s32.totalorder %v417, %v450
        %vm525 = vcmp.eq.s32.totalorder %v417, %v453
        %vm526 = vcmp.eq.s32.totalorder %v417, %v456
        %vm527 = vcmp.eq.s32.totalorder %v417, %v459
        %vm528 = vcmp.eq.s32.totalorder %v417, %v462
        %vm529 = vcmp.eq.s32.totalorder %v417, %v465
        %vm530 = vcmp.eq.s32.totalorder %v417, %v468
        %vm531 = vcmp.eq.s32.totalorder %v417, %v471
        %vm532 = vcmp.eq.s32.totalorder %v417, %v474
        %vm533 = vcmp.eq.s32.totalorder %v417, %v477
        %vm534 = vcmp.eq.s32.totalorder %v417, %v480
        %vm535 = vcmp.eq.s32.totalorder %v417, %v483
        %vm536 = vcmp.eq.s32.totalorder %v417, %v486
        %vm537 = vcmp.eq.s32.totalorder %v417, %v489
        %vm538 = vcmp.eq.s32.totalorder %v417, %v492
        %vm539 = vcmp.eq.s32.totalorder %v417, %v495
        %vm540 = vcmp.eq.s32.totalorder %v417, %v498
        %vm541 = vcmp.eq.s32.totalorder %v417, %v501
        %vm542 = vcmp.eq.s32.totalorder %v417, %v504
        %vm543 = vcmp.eq.s32.totalorder %v417, %v507
        %vm544 = vcmp.eq.s32.totalorder %v417, %v510
        %vm545 = vcmp.eq.s32.totalorder %v417, %v513
        %v546 = vadd.s32 %v384, 24
        %v547 = vadd.s32 %v385, 24
        %v548 = vadd.s32 %v386, 24
        %v549 = vadd.s32 %v387, 24
        %v550 = vadd.s32 %v388, 24
        %v551 = vadd.s32 %v389, 24
        %v552 = vadd.s32 %v390, 24
        %v553 = vadd.s32 %v391, 24
        %v554 = vadd.s32 %v392, 24
        %v555 = vadd.s32 %v393, 24
        %v556 = vadd.s32 %v394, 24
        %v557 = vadd.s32 %v395, 24
        %v558 = vadd.s32 %v396, 24
        %v559 = vadd.s32 %v397, 24
        %v560 = vadd.s32 %v398, 24
        %v561 = vadd.s32 %v399, 24
        %v562 = vadd.s32 %v400, 24
        %v563 = vadd.s32 %v401, 24
        %v564 = vadd.s32 %v402, 24
        %v565 = vadd.s32 %v403, 24
        %v566 = vadd.s32 %v404, 24
        %v567 = vadd.s32 %v405, 24
        %v568 = vadd.s32 %v406, 24
        %v569 = vadd.s32 %v407, 24
        %v570 = vadd.s32 %v408, 24
        %v571 = vadd.s32 %v409, 24
        %v572 = vadd.s32 %v410, 24
        %v573 = vadd.s32 %v411, 24
        %v574 = vadd.s32 %v412, 24
        %v575 = vadd.s32 %v413, 24
        %v576 = vadd.s32 %v414, 24
        %v577 = vadd.s32 %v415, 24
        %578 = vset.pattern.permute.xlu0 1
        %579 = vperm.xlu0 %578, %v546
        %v580 = vpop.permute.xlu0 %579
        %581 = vset.pattern.permute.xlu0 1
        %582 = vperm.xlu0 %581, %v547
        %v583 = vpop.permute.xlu0 %582
        %584 = vset.pattern.permute.xlu0 1
        %585 = vperm.xlu0 %584, %v548
        %v586 = vpop.permute.xlu0 %585
        %587 = vset.pattern.permute.xlu0 1
        %588 = vperm.xlu0 %587, %v549
        %v589 = vpop.permute.xlu0 %588
        %590 = vset.pattern.permute.xlu0 1
        %591 = vperm.xlu0 %590, %v550
        %v592 = vpop.permute.xlu0 %591
        %593 = vset.pattern.permute.xlu0 1
        %594 = vperm.xlu0 %593, %v551
        %v595 = vpop.permute.xlu0 %594
        %596 = vset.pattern.permute.xlu0 1
        %597 = vperm.xlu0 %596, %v552
        %v598 = vpop.permute.xlu0 %597
        %599 = vset.pattern.permute.xlu0 1
        %600 = vperm.xlu0 %599, %v553
        %v601 = vpop.permute.xlu0 %600
        %602 = vset.pattern.permute.xlu0 1
        %603 = vperm.xlu0 %602, %v554
        %v604 = vpop.permute.xlu0 %603
        %605 = vset.pattern.permute.xlu0 1
        %606 = vperm.xlu0 %605, %v555
        %v607 = vpop.permute.xlu0 %606
        %608 = vset.pattern.permute.xlu0 1
        %609 = vperm.xlu0 %608, %v556
        %v610 = vpop.permute.xlu0 %609
        %611 = vset.pattern.permute.xlu0 1
        %612 = vperm.xlu0 %611, %v557
        %v613 = vpop.permute.xlu0 %612
        %614 = vset.pattern.permute.xlu0 1
        %615 = vperm.xlu0 %614, %v558
        %v616 = vpop.permute.xlu0 %615
        %617 = vset.pattern.permute.xlu0 1
        %618 = vperm.xlu0 %617, %v559
        %v619 = vpop.permute.xlu0 %618
        %620 = vset.pattern.permute.xlu0 1
        %621 = vperm.xlu0 %620, %v560
        %v622 = vpop.permute.xlu0 %621
        %623 = vset.pattern.permute.xlu0 1
        %624 = vperm.xlu0 %623, %v561
        %v625 = vpop.permute.xlu0 %624
        %626 = vset.pattern.permute.xlu0 1
        %627 = vperm.xlu0 %626, %v562
        %v628 = vpop.permute.xlu0 %627
        %629 = vset.pattern.permute.xlu0 1
        %630 = vperm.xlu0 %629, %v563
        %v631 = vpop.permute.xlu0 %630
        %632 = vset.pattern.permute.xlu0 1
        %633 = vperm.xlu0 %632, %v564
        %v634 = vpop.permute.xlu0 %633
        %635 = vset.pattern.permute.xlu0 1
        %636 = vperm.xlu0 %635, %v565
        %v637 = vpop.permute.xlu0 %636
        %638 = vset.pattern.permute.xlu0 1
        %639 = vperm.xlu0 %638, %v566
        %v640 = vpop.permute.xlu0 %639
        %641 = vset.pattern.permute.xlu0 1
        %642 = vperm.xlu0 %641, %v567
        %v643 = vpop.permute.xlu0 %642
        %644 = vset.pattern.permute.xlu0 1
        %645 = vperm.xlu0 %644, %v568
        %v646 = vpop.permute.xlu0 %645
        %647 = vset.pattern.permute.xlu0 1
        %648 = vperm.xlu0 %647, %v569
        %v649 = vpop.permute.xlu0 %648
        %650 = vset.pattern.permute.xlu0 1
        %651 = vperm.xlu0 %650, %v570
        %v652 = vpop.permute.xlu0 %651
        %653 = vset.pattern.permute.xlu0 1
        %654 = vperm.xlu0 %653, %v571
        %v655 = vpop.permute.xlu0 %654
        %656 = vset.pattern.permute.xlu0 1
        %657 = vperm.xlu0 %656, %v572
        %v658 = vpop.permute.xlu0 %657
        %659 = vset.pattern.permute.xlu0 1
        %660 = vperm.xlu0 %659, %v573
        %v661 = vpop.permute.xlu0 %660
        %662 = vset.pattern.permute.xlu0 1
        %663 = vperm.xlu0 %662, %v574
        %v664 = vpop.permute.xlu0 %663
        %665 = vset.pattern.permute.xlu0 1
        %666 = vperm.xlu0 %665, %v575
        %v667 = vpop.permute.xlu0 %666
        %668 = vset.pattern.permute.xlu0 1
        %669 = vperm.xlu0 %668, %v576
        %v670 = vpop.permute.xlu0 %669
        %671 = vset.pattern.permute.xlu0 1
        %672 = vperm.xlu0 %671, %v577
        %v673 = vpop.permute.xlu0 %672
        %vm674 = vcmp.eq.s32.totalorder %v417, %v580
        %vm675 = vcmp.eq.s32.totalorder %v417, %v583
        %vm676 = vcmp.eq.s32.totalorder %v417, %v586
        %vm677 = vcmp.eq.s32.totalorder %v417, %v589
        %vm678 = vcmp.eq.s32.totalorder %v417, %v592
        %vm679 = vcmp.eq.s32.totalorder %v417, %v595
        %vm680 = vcmp.eq.s32.totalorder %v417, %v598
        %vm681 = vcmp.eq.s32.totalorder %v417, %v601
        %vm682 = vcmp.eq.s32.totalorder %v417, %v604
        %vm683 = vcmp.eq.s32.totalorder %v417, %v607
        %vm684 = vcmp.eq.s32.totalorder %v417, %v610
        %vm685 = vcmp.eq.s32.totalorder %v417, %v613
        %vm686 = vcmp.eq.s32.totalorder %v417, %v616
        %vm687 = vcmp.eq.s32.totalorder %v417, %v619
        %vm688 = vcmp.eq.s32.totalorder %v417, %v622
        %vm689 = vcmp.eq.s32.totalorder %v417, %v625
        %vm690 = vcmp.eq.s32.totalorder %v417, %v628
        %vm691 = vcmp.eq.s32.totalorder %v417, %v631
        %vm692 = vcmp.eq.s32.totalorder %v417, %v634
        %vm693 = vcmp.eq.s32.totalorder %v417, %v637
        %vm694 = vcmp.eq.s32.totalorder %v417, %v640
        %vm695 = vcmp.eq.s32.totalorder %v417, %v643
        %vm696 = vcmp.eq.s32.totalorder %v417, %v646
        %vm697 = vcmp.eq.s32.totalorder %v417, %v649
        %vm698 = vcmp.eq.s32.totalorder %v417, %v652
        %vm699 = vcmp.eq.s32.totalorder %v417, %v655
        %vm700 = vcmp.eq.s32.totalorder %v417, %v658
        %vm701 = vcmp.eq.s32.totalorder %v417, %v661
        %vm702 = vcmp.eq.s32.totalorder %v417, %v664
        %vm703 = vcmp.eq.s32.totalorder %v417, %v667
        %vm704 = vcmp.eq.s32.totalorder %v417, %v670
        %vm705 = vcmp.eq.s32.totalorder %v417, %v673
        %vm706 = vmor %vm514, %vm674
        %vm707 = vmor %vm515, %vm675
        %vm708 = vmor %vm516, %vm676
        %vm709 = vmor %vm517, %vm677
        %vm710 = vmor %vm518, %vm678
        %vm711 = vmor %vm519, %vm679
        %vm712 = vmor %vm520, %vm680
        %vm713 = vmor %vm521, %vm681
        %vm714 = vmor %vm522, %vm682
        %vm715 = vmor %vm523, %vm683
        %vm716 = vmor %vm524, %vm684
        %vm717 = vmor %vm525, %vm685
        %vm718 = vmor %vm526, %vm686
        %vm719 = vmor %vm527, %vm687
        %vm720 = vmor %vm528, %vm688
        %vm721 = vmor %vm529, %vm689
        %vm722 = vmor %vm530, %vm690
        %vm723 = vmor %vm531, %vm691
        %vm724 = vmor %vm532, %vm692
        %vm725 = vmor %vm533, %vm693
        %vm726 = vmor %vm534, %vm694
        %vm727 = vmor %vm535, %vm695
        %vm728 = vmor %vm536, %vm696
        %vm729 = vmor %vm537, %vm697
        %vm730 = vmor %vm538, %vm698
        %vm731 = vmor %vm539, %vm699
        %vm732 = vmor %vm540, %vm700
        %vm733 = vmor %vm541, %vm701
        %vm734 = vmor %vm542, %vm702
        %vm735 = vmor %vm543, %vm703
        %vm736 = vmor %vm544, %vm704
        %vm737 = vmor %vm545, %vm705
        %v738 = vadd.s32 %v384, 26
        %v739 = vadd.s32 %v385, 26
        %v740 = vadd.s32 %v386, 26
        %v741 = vadd.s32 %v387, 26
        %v742 = vadd.s32 %v388, 26
        %v743 = vadd.s32 %v389, 26
        %v744 = vadd.s32 %v390, 26
        %v745 = vadd.s32 %v391, 26
        %v746 = vadd.s32 %v392, 26
        %v747 = vadd.s32 %v393, 26
        %v748 = vadd.s32 %v394, 26
        %v749 = vadd.s32 %v395, 26
        %v750 = vadd.s32 %v396, 26
        %v751 = vadd.s32 %v397, 26
        %v752 = vadd.s32 %v398, 26
        %v753 = vadd.s32 %v399, 26
        %v754 = vadd.s32 %v400, 26
        %v755 = vadd.s32 %v401, 26
        %v756 = vadd.s32 %v402, 26
        %v757 = vadd.s32 %v403, 26
        %v758 = vadd.s32 %v404, 26
        %v759 = vadd.s32 %v405, 26
        %v760 = vadd.s32 %v406, 26
        %v761 = vadd.s32 %v407, 26
        %v762 = vadd.s32 %v408, 26
        %v763 = vadd.s32 %v409, 26
        %v764 = vadd.s32 %v410, 26
        %v765 = vadd.s32 %v411, 26
        %v766 = vadd.s32 %v412, 26
        %v767 = vadd.s32 %v413, 26
        %v768 = vadd.s32 %v414, 26
        %v769 = vadd.s32 %v415, 26
        %770 = vset.pattern.permute.xlu0 2
        %771 = vperm.xlu0 %770, %v738
        %v772 = vpop.permute.xlu0 %771
        %773 = vset.pattern.permute.xlu0 2
        %774 = vperm.xlu0 %773, %v739
        %v775 = vpop.permute.xlu0 %774
        %776 = vset.pattern.permute.xlu0 2
        %777 = vperm.xlu0 %776, %v740
        %v778 = vpop.permute.xlu0 %777
        %779 = vset.pattern.permute.xlu0 2
        %780 = vperm.xlu0 %779, %v741
        %v781 = vpop.permute.xlu0 %780
        %782 = vset.pattern.permute.xlu0 2
        %783 = vperm.xlu0 %782, %v742
        %v784 = vpop.permute.xlu0 %783
        %785 = vset.pattern.permute.xlu0 2
        %786 = vperm.xlu0 %785, %v743
        %v787 = vpop.permute.xlu0 %786
        %788 = vset.pattern.permute.xlu0 2
        %789 = vperm.xlu0 %788, %v744
        %v790 = vpop.permute.xlu0 %789
        %791 = vset.pattern.permute.xlu0 2
        %792 = vperm.xlu0 %791, %v745
        %v793 = vpop.permute.xlu0 %792
        %794 = vset.pattern.permute.xlu0 2
        %795 = vperm.xlu0 %794, %v746
        %v796 = vpop.permute.xlu0 %795
        %797 = vset.pattern.permute.xlu0 2
        %798 = vperm.xlu0 %797, %v747
        %v799 = vpop.permute.xlu0 %798
        %800 = vset.pattern.permute.xlu0 2
        %801 = vperm.xlu0 %800, %v748
        %v802 = vpop.permute.xlu0 %801
        %803 = vset.pattern.permute.xlu0 2
        %804 = vperm.xlu0 %803, %v749
        %v805 = vpop.permute.xlu0 %804
        %806 = vset.pattern.permute.xlu0 2
        %807 = vperm.xlu0 %806, %v750
        %v808 = vpop.permute.xlu0 %807
        %809 = vset.pattern.permute.xlu0 2
        %810 = vperm.xlu0 %809, %v751
        %v811 = vpop.permute.xlu0 %810
        %812 = vset.pattern.permute.xlu0 2
        %813 = vperm.xlu0 %812, %v752
        %v814 = vpop.permute.xlu0 %813
        %815 = vset.pattern.permute.xlu0 2
        %816 = vperm.xlu0 %815, %v753
        %v817 = vpop.permute.xlu0 %816
        %818 = vset.pattern.permute.xlu0 2
        %819 = vperm.xlu0 %818, %v754
        %v820 = vpop.permute.xlu0 %819
        %821 = vset.pattern.permute.xlu0 2
        %822 = vperm.xlu0 %821, %v755
        %v823 = vpop.permute.xlu0 %822
        %824 = vset.pattern.permute.xlu0 2
        %825 = vperm.xlu0 %824, %v756
        %v826 = vpop.permute.xlu0 %825
        %827 = vset.pattern.permute.xlu0 2
        %828 = vperm.xlu0 %827, %v757
        %v829 = vpop.permute.xlu0 %828
        %830 = vset.pattern.permute.xlu0 2
        %831 = vperm.xlu0 %830, %v758
        %v832 = vpop.permute.xlu0 %831
        %833 = vset.pattern.permute.xlu0 2
        %834 = vperm.xlu0 %833, %v759
        %v835 = vpop.permute.xlu0 %834
        %836 = vset.pattern.permute.xlu0 2
        %837 = vperm.xlu0 %836, %v760
        %v838 = vpop.permute.xlu0 %837
        %839 = vset.pattern.permute.xlu0 2
        %840 = vperm.xlu0 %839, %v761
        %v841 = vpop.permute.xlu0 %840
        %842 = vset.pattern.permute.xlu0 2
        %843 = vperm.xlu0 %842, %v762
        %v844 = vpop.permute.xlu0 %843
        %845 = vset.pattern.permute.xlu0 2
        %846 = vperm.xlu0 %845, %v763
        %v847 = vpop.permute.xlu0 %846
        %848 = vset.pattern.permute.xlu0 2
        %849 = vperm.xlu0 %848, %v764
        %v850 = vpop.permute.xlu0 %849
        %851 = vset.pattern.permute.xlu0 2
        %852 = vperm.xlu0 %851, %v765
        %v853 = vpop.permute.xlu0 %852
        %854 = vset.pattern.permute.xlu0 2
        %855 = vperm.xlu0 %854, %v766
        %v856 = vpop.permute.xlu0 %855
        %857 = vset.pattern.permute.xlu0 2
        %858 = vperm.xlu0 %857, %v767
        %v859 = vpop.permute.xlu0 %858
        %860 = vset.pattern.permute.xlu0 2
        %861 = vperm.xlu0 %860, %v768
        %v862 = vpop.permute.xlu0 %861
        %863 = vset.pattern.permute.xlu0 2
        %864 = vperm.xlu0 %863, %v769
        %v865 = vpop.permute.xlu0 %864
        %vm866 = vcmp.eq.s32.totalorder %v417, %v772
        %vm867 = vcmp.eq.s32.totalorder %v417, %v775
        %vm868 = vcmp.eq.s32.totalorder %v417, %v778
        %vm869 = vcmp.eq.s32.totalorder %v417, %v781
        %vm870 = vcmp.eq.s32.totalorder %v417, %v784
        %vm871 = vcmp.eq.s32.totalorder %v417, %v787
        %vm872 = vcmp.eq.s32.totalorder %v417, %v790
        %vm873 = vcmp.eq.s32.totalorder %v417, %v793
        %vm874 = vcmp.eq.s32.totalorder %v417, %v796
        %vm875 = vcmp.eq.s32.totalorder %v417, %v799
        %vm876 = vcmp.eq.s32.totalorder %v417, %v802
        %vm877 = vcmp.eq.s32.totalorder %v417, %v805
        %vm878 = vcmp.eq.s32.totalorder %v417, %v808
        %vm879 = vcmp.eq.s32.totalorder %v417, %v811
        %vm880 = vcmp.eq.s32.totalorder %v417, %v814
        %vm881 = vcmp.eq.s32.totalorder %v417, %v817
        %vm882 = vcmp.eq.s32.totalorder %v417, %v820
        %vm883 = vcmp.eq.s32.totalorder %v417, %v823
        %vm884 = vcmp.eq.s32.totalorder %v417, %v826
        %vm885 = vcmp.eq.s32.totalorder %v417, %v829
        %vm886 = vcmp.eq.s32.totalorder %v417, %v832
        %vm887 = vcmp.eq.s32.totalorder %v417, %v835
        %vm888 = vcmp.eq.s32.totalorder %v417, %v838
        %vm889 = vcmp.eq.s32.totalorder %v417, %v841
        %vm890 = vcmp.eq.s32.totalorder %v417, %v844
        %vm891 = vcmp.eq.s32.totalorder %v417, %v847
        %vm892 = vcmp.eq.s32.totalorder %v417, %v850
        %vm893 = vcmp.eq.s32.totalorder %v417, %v853
        %vm894 = vcmp.eq.s32.totalorder %v417, %v856
        %vm895 = vcmp.eq.s32.totalorder %v417, %v859
        %vm896 = vcmp.eq.s32.totalorder %v417, %v862
        %vm897 = vcmp.eq.s32.totalorder %v417, %v865
        %vm898 = vmor %vm706, %vm866
        %vm899 = vmor %vm707, %vm867
        %vm900 = vmor %vm708, %vm868
        %vm901 = vmor %vm709, %vm869
        %vm902 = vmor %vm710, %vm870
        %vm903 = vmor %vm711, %vm871
        %vm904 = vmor %vm712, %vm872
        %vm905 = vmor %vm713, %vm873
        %vm906 = vmor %vm714, %vm874
        %vm907 = vmor %vm715, %vm875
        %vm908 = vmor %vm716, %vm876
        %vm909 = vmor %vm717, %vm877
        %vm910 = vmor %vm718, %vm878
        %vm911 = vmor %vm719, %vm879
        %vm912 = vmor %vm720, %vm880
        %vm913 = vmor %vm721, %vm881
        %vm914 = vmor %vm722, %vm882
        %vm915 = vmor %vm723, %vm883
        %vm916 = vmor %vm724, %vm884
        %vm917 = vmor %vm725, %vm885
        %vm918 = vmor %vm726, %vm886
        %vm919 = vmor %vm727, %vm887
        %vm920 = vmor %vm728, %vm888
        %vm921 = vmor %vm729, %vm889
        %vm922 = vmor %vm730, %vm890
        %vm923 = vmor %vm731, %vm891
        %vm924 = vmor %vm732, %vm892
        %vm925 = vmor %vm733, %vm893
        %vm926 = vmor %vm734, %vm894
        %vm927 = vmor %vm735, %vm895
        %vm928 = vmor %vm736, %vm896
        %vm929 = vmor %vm737, %vm897
        %v930 = vsel %vm898, 1, 0
        %v931 = vsel %vm899, 1, 0
        %v932 = vsel %vm900, 1, 0
        %v933 = vsel %vm901, 1, 0
        %v934 = vsel %vm902, 1, 0
        %v935 = vsel %vm903, 1, 0
        %v936 = vsel %vm904, 1, 0
        %v937 = vsel %vm905, 1, 0
        %v938 = vsel %vm906, 1, 0
        %v939 = vsel %vm907, 1, 0
        %v940 = vsel %vm908, 1, 0
        %v941 = vsel %vm909, 1, 0
        %v942 = vsel %vm910, 1, 0
        %v943 = vsel %vm911, 1, 0
        %v944 = vsel %vm912, 1, 0
        %v945 = vsel %vm913, 1, 0
        %v946 = vsel %vm914, 1, 0
        %v947 = vsel %vm915, 1, 0
        %v948 = vsel %vm916, 1, 0
        %v949 = vsel %vm917, 1, 0
        %v950 = vsel %vm918, 1, 0
        %v951 = vsel %vm919, 1, 0
        %v952 = vsel %vm920, 1, 0
        %v953 = vsel %vm921, 1, 0
        %v954 = vsel %vm922, 1, 0
        %v955 = vsel %vm923, 1, 0
        %v956 = vsel %vm924, 1, 0
        %v957 = vsel %vm925, 1, 0
        %v958 = vsel %vm926, 1, 0
        %v959 = vsel %vm927, 1, 0
        %v960 = vsel %vm928, 1, 0
        %v961 = vsel %vm929, 1, 0
        %v962 = vcvt.s32.f32 %v930
        %v963 = vcvt.s32.f32 %v931
        %v964 = vcvt.s32.f32 %v932
        %v965 = vcvt.s32.f32 %v933
        %v966 = vcvt.s32.f32 %v934
        %v967 = vcvt.s32.f32 %v935
        %v968 = vcvt.s32.f32 %v936
        %v969 = vcvt.s32.f32 %v937
        %v970 = vcvt.s32.f32 %v938
        %v971 = vcvt.s32.f32 %v939
        %v972 = vcvt.s32.f32 %v940
        %v973 = vcvt.s32.f32 %v941
        %v974 = vcvt.s32.f32 %v942
        %v975 = vcvt.s32.f32 %v943
        %v976 = vcvt.s32.f32 %v944
        %v977 = vcvt.s32.f32 %v945
        %v978 = vcvt.s32.f32 %v946
        %v979 = vcvt.s32.f32 %v947
        %v980 = vcvt.s32.f32 %v948
        %v981 = vcvt.s32.f32 %v949
        %v982 = vcvt.s32.f32 %v950
        %v983 = vcvt.s32.f32 %v951
        %v984 = vcvt.s32.f32 %v952
        %v985 = vcvt.s32.f32 %v953
        %v986 = vcvt.s32.f32 %v954
        %v987 = vcvt.s32.f32 %v955
        %v988 = vcvt.s32.f32 %v956
        %v989 = vcvt.s32.f32 %v957
        %v990 = vcvt.s32.f32 %v958
        %v991 = vcvt.s32.f32 %v959
        %v992 = vcvt.s32.f32 %v960
        %v993 = vcvt.s32.f32 %v961
        %v994 = vld [vmem:[%s2] sm:$0xff]
        %v995 = vld [vmem:[%s2 + $0x8] sm:$0xff]
        %v996 = vld [vmem:[%s2 + $0x10] sm:$0xff]
        %v997 = vld [vmem:[%s2 + $0x18] sm:$0xff]
        %v998 = vld [vmem:[%s2 + $0x20] sm:$0xff]
        %v999 = vld [vmem:[%s2 + $0x28] sm:$0xff]
        %v1000 = vld [vmem:[%s2 + $0x30] sm:$0xff]
        %v1001 = vld [vmem:[%s2 + $0x38] sm:$0xff]
        %v1002 = vld [vmem:[%s2 + $0x40] sm:$0xff]
        %v1003 = vld [vmem:[%s2 + $0x48] sm:$0xff]
        %v1004 = vld [vmem:[%s2 + $0x50] sm:$0xff]
        %v1005 = vld [vmem:[%s2 + $0x58] sm:$0xff]
        %v1006 = vld [vmem:[%s2 + $0x60] sm:$0xff]
        %v1007 = vld [vmem:[%s2 + $0x68] sm:$0xff]
        %v1008 = vld [vmem:[%s2 + $0x70] sm:$0xff]
        %v1009 = vld [vmem:[%s2 + $0x78] sm:$0xff]
        %1010 = vmatprep.subr.mxu0 0.0
        %1011 = vmatpush1.msra.mxu0 %v994
        %1012 = vmatprep.subr.mxu0 0.0
        %1013 = vmatpush1.msra.mxu0 %v995
        %1014 = vmatprep.subr.mxu0 0.0
        %1015 = vmatpush1.msra.mxu0 %v996
        %1016 = vmatprep.subr.mxu0 0.0
        %1017 = vmatpush1.msra.mxu0 %v997
        %1018 = vmatprep.subr.mxu0 0.0
        %1019 = vmatpush1.msra.mxu0 %v998
        %1020 = vmatprep.subr.mxu0 0.0
        %1021 = vmatpush1.msra.mxu0 %v999
        %1022 = vmatprep.subr.mxu0 0.0
        %1023 = vmatpush1.msra.mxu0 %v1000
        %1024 = vmatprep.subr.mxu0 0.0
        %1025 = vmatpush1.msra.mxu0 %v1001
        %1026 = vmatprep.subr.mxu0 0.0
        %1027 = vmatpush1.msra.mxu0 %v1002
        %1028 = vmatprep.subr.mxu0 0.0
        %1029 = vmatpush1.msra.mxu0 %v1003
        %1030 = vmatprep.subr.mxu0 0.0
        %1031 = vmatpush1.msra.mxu0 %v1004
        %1032 = vmatprep.subr.mxu0 0.0
        %1033 = vmatpush1.msra.mxu0 %v1005
        %1034 = vmatprep.subr.mxu0 0.0
        %1035 = vmatpush1.msra.mxu0 %v1006
        %1036 = vmatprep.subr.mxu0 0.0
        %1037 = vmatpush1.msra.mxu0 %v1007
        %1038 = vmatprep.subr.mxu0 0.0
        %1039 = vmatpush1.msra.mxu0 %v1008
        %1040 = vmatprep.subr.mxu0 0.0
        %1041 = vmatpush1.msra.mxu0 %v1009
        %1042 = vmatprep.subr.mxu0 0.0
        %1043 = vmatpush1.msra.mxu0 0.0
        %1044 = vmatprep.subr.mxu0 0.0
        %1045 = vmatpush1.msra.mxu0 0.0
        %1046 = vmatprep.subr.mxu0 0.0
        %1047 = vmatpush1.msra.mxu0 0.0
        %1048 = vmatprep.subr.mxu0 0.0
        %1049 = vmatpush1.msra.mxu0 0.0
        %1050 = vmatprep.subr.mxu0 0.0
        %1051 = vmatpush1.msra.mxu0 0.0
        %1052 = vmatprep.subr.mxu0 0.0
        %1053 = vmatpush1.msra.mxu0 0.0
        %1054 = vmatprep.subr.mxu0 0.0
        %1055 = vmatpush1.msra.mxu0 0.0
        %1056 = vmatprep.subr.mxu0 0.0
        %1057 = vmatpush1.msra.mxu0 0.0
        %1058 = vmatprep.subr.mxu0 0.0
        %1059 = vmatpush1.msra.mxu0 0.0
        %1060 = vmatprep.subr.mxu0 0.0
        %1061 = vmatpush1.msra.mxu0 0.0
        %1062 = vmatprep.subr.mxu0 0.0
        %1063 = vmatpush1.msra.mxu0 0.0
        %1064 = vmatprep.subr.mxu0 0.0
        %1065 = vmatpush1.msra.mxu0 0.0
        %1066 = vmatprep.subr.mxu0 0.0
        %1067 = vmatpush1.msra.mxu0 0.0
        %1068 = vmatprep.subr.mxu0 0.0
        %1069 = vmatpush1.msra.mxu0 0.0
        %1070 = vmatprep.subr.mxu0 0.0
        %1071 = vmatpush1.msra.mxu0 0.0
        %1072 = vmatprep.subr.mxu0 0.0
        %1073 = vmatpush1.msra.mxu0 0.0
        %1074 = vmatprep.mubr.f32.mxu0 0.0
        %1075 = vmatmul.mubr.f32.gmra.mrb[0].mxu0 %v962
        %v1076 = vpop.f32.mrb[0].mxu0
        %v1077 = vadd.f32 0.0, %v1076
        %v1078 = vpop.f32.mrb[0].mxu0
        %1079 = vmatprep.mubr.f32.mxu0 0.0
        %1080 = vmatmul.mubr.f32.gmra.mrb[0].mxu0 %v963
        %v1081 = vpop.f32.mrb[0].mxu0
        %v1082 = vadd.f32 0.0, %v1081
        %v1083 = vpop.f32.mrb[0].mxu0
        %1084 = vmatprep.mubr.f32.mxu0 0.0
        %1085 = vmatmul.mubr.f32.gmra.mrb[0].mxu0 %v964
        %v1086 = vpop.f32.mrb[0].mxu0
        %v1087 = vadd.f32 0.0, %v1086
        %v1088 = vpop.f32.mrb[0].mxu0
        %1089 = vmatprep.mubr.f32.mxu0 0.0
        %1090 = vmatmul.mubr.f32.gmra.mrb[0].mxu0 %v965
        %v1091 = vpop.f32.mrb[0].mxu0
        %v1092 = vadd.f32 0.0, %v1091
        %v1093 = vpop.f32.mrb[0].mxu0
        %1094 = vmatprep.mubr.f32.mxu0 0.0
        %1095 = vmatmul.mubr.f32.gmra.mrb[0].mxu0 %v966
        %v1096 = vpop.f32.mrb[0].mxu0
        %v1097 = vadd.f32 0.0, %v1096
        %v1098 = vpop.f32.mrb[0].mxu0
        %1099 = vmatprep.mubr.f32.mxu0 0.0
        %1100 = vmatmul.mubr.f32.gmra.mrb[0].mxu0 %v967
        %v1101 = vpop.f32.mrb[0].mxu0
        %v1102 = vadd.f32 0.0, %v1101
        %v1103 = vpop.f32.mrb[0].mxu0
        %1104 = vmatprep.mubr.f32.mxu0 0.0
        %1105 = vmatmul.mubr.f32.gmra.mrb[0].mxu0 %v968
        %v1106 = vpop.f32.mrb[0].mxu0
        %v1107 = vadd.f32 0.0, %v1106
        %v1108 = vpop.f32.mrb[0].mxu0
        %1109 = vmatprep.mubr.f32.mxu0 0.0
        %1110 = vmatmul.mubr.f32.gmra.mrb[0].mxu0 %v969
        %v1111 = vpop.f32.mrb[0].mxu0
        %v1112 = vadd.f32 0.0, %v1111
        %v1113 = vpop.f32.mrb[0].mxu0
        %1114 = vmatprep.mubr.f32.mxu0 0.0
        %1115 = vmatmul.mubr.f32.gmra.mrb[0].mxu0 %v970
        %v1116 = vpop.f32.mrb[0].mxu0
        %v1117 = vadd.f32 0.0, %v1116
        %v1118 = vpop.f32.mrb[0].mxu0
        %1119 = vmatprep.mubr.f32.mxu0 0.0
        %1120 = vmatmul.mubr.f32.gmra.mrb[0].mxu0 %v971
        %v1121 = vpop.f32.mrb[0].mxu0
        %v1122 = vadd.f32 0.0, %v1121
        %v1123 = vpop.f32.mrb[0].mxu0
        %1124 = vmatprep.mubr.f32.mxu0 0.0
        %1125 = vmatmul.mubr.f32.gmra.mrb[0].mxu0 %v972
        %v1126 = vpop.f32.mrb[0].mxu0
        %v1127 = vadd.f32 0.0, %v1126
        %v1128 = vpop.f32.mrb[0].mxu0
        %1129 = vmatprep.mubr.f32.mxu0 0.0
        %1130 = vmatmul.mubr.f32.gmra.mrb[0].mxu0 %v973
        %v1131 = vpop.f32.mrb[0].mxu0
        %v1132 = vadd.f32 0.0, %v1131
        %v1133 = vpop.f32.mrb[0].mxu0
        %1134 = vmatprep.mubr.f32.mxu0 0.0
        %1135 = vmatmul.mubr.f32.gmra.mrb[0].mxu0 %v974
        %v1136 = vpop.f32.mrb[0].mxu0
        %v1137 = vadd.f32 0.0, %v1136
        %v1138 = vpop.f32.mrb[0].mxu0
        %1139 = vmatprep.mubr.f32.mxu0 0.0
        %1140 = vmatmul.mubr.f32.gmra.mrb[0].mxu0 %v975
        %v1141 = vpop.f32.mrb[0].mxu0
        %v1142 = vadd.f32 0.0, %v1141
        %v1143 = vpop.f32.mrb[0].mxu0
        %1144 = vmatprep.mubr.f32.mxu0 0.0
        %1145 = vmatmul.mubr.f32.gmra.mrb[0].mxu0 %v976
        %v1146 = vpop.f32.mrb[0].mxu0
        %v1147 = vadd.f32 0.0, %v1146
        %v1148 = vpop.f32.mrb[0].mxu0
        %1149 = vmatprep.mubr.f32.mxu0 0.0
        %1150 = vmatmul.mubr.f32.gmra.mrb[0].mxu0 %v977
        %v1151 = vpop.f32.mrb[0].mxu0
        %v1152 = vadd.f32 0.0, %v1151
        %v1153 = vpop.f32.mrb[0].mxu0
        %1154 = vmatprep.mubr.f32.mxu0 0.0
        %1155 = vmatmul.mubr.f32.gmra.mrb[0].mxu0 %v978
        %v1156 = vpop.f32.mrb[0].mxu0
        %v1157 = vadd.f32 0.0, %v1156
        %v1158 = vpop.f32.mrb[0].mxu0
        %1159 = vmatprep.mubr.f32.mxu0 0.0
        %1160 = vmatmul.mubr.f32.gmra.mrb[0].mxu0 %v979
        %v1161 = vpop.f32.mrb[0].mxu0
        %v1162 = vadd.f32 0.0, %v1161
        %v1163 = vpop.f32.mrb[0].mxu0
        %1164 = vmatprep.mubr.f32.mxu0 0.0
        %1165 = vmatmul.mubr.f32.gmra.mrb[0].mxu0 %v980
        %v1166 = vpop.f32.mrb[0].mxu0
        %v1167 = vadd.f32 0.0, %v1166
        %v1168 = vpop.f32.mrb[0].mxu0
        %1169 = vmatprep.mubr.f32.mxu0 0.0
        %1170 = vmatmul.mubr.f32.gmra.mrb[0].mxu0 %v981
        %v1171 = vpop.f32.mrb[0].mxu0
        %v1172 = vadd.f32 0.0, %v1171
        %v1173 = vpop.f32.mrb[0].mxu0
        %1174 = vmatprep.mubr.f32.mxu0 0.0
        %1175 = vmatmul.mubr.f32.gmra.mrb[0].mxu0 %v982
        %v1176 = vpop.f32.mrb[0].mxu0
        %v1177 = vadd.f32 0.0, %v1176
        %v1178 = vpop.f32.mrb[0].mxu0
        %1179 = vmatprep.mubr.f32.mxu0 0.0
        %1180 = vmatmul.mubr.f32.gmra.mrb[0].mxu0 %v983
        %v1181 = vpop.f32.mrb[0].mxu0
        %v1182 = vadd.f32 0.0, %v1181
        %v1183 = vpop.f32.mrb[0].mxu0
        %1184 = vmatprep.mubr.f32.mxu0 0.0
        %1185 = vmatmul.mubr.f32.gmra.mrb[0].mxu0 %v984
        %v1186 = vpop.f32.mrb[0].mxu0
        %v1187 = vadd.f32 0.0, %v1186
        %v1188 = vpop.f32.mrb[0].mxu0
        %1189 = vmatprep.mubr.f32.mxu0 0.0
        %1190 = vmatmul.mubr.f32.gmra.mrb[0].mxu0 %v985
        %v1191 = vpop.f32.mrb[0].mxu0
        %v1192 = vadd.f32 0.0, %v1191
        %v1193 = vpop.f32.mrb[0].mxu0
        %1194 = vmatprep.mubr.f32.mxu0 0.0
        %1195 = vmatmul.mubr.f32.gmra.mrb[0].mxu0 %v986
        %v1196 = vpop.f32.mrb[0].mxu0
        %v1197 = vadd.f32 0.0, %v1196
        %v1198 = vpop.f32.mrb[0].mxu0
        %1199 = vmatprep.mubr.f32.mxu0 0.0
        %1200 = vmatmul.mubr.f32.gmra.mrb[0].mxu0 %v987
        %v1201 = vpop.f32.mrb[0].mxu0
        %v1202 = vadd.f32 0.0, %v1201
        %v1203 = vpop.f32.mrb[0].mxu0
        %1204 = vmatprep.mubr.f32.mxu0 0.0
        %1205 = vmatmul.mubr.f32.gmra.mrb[0].mxu0 %v988
        %v1206 = vpop.f32.mrb[0].mxu0
        %v1207 = vadd.f32 0.0, %v1206
        %v1208 = vpop.f32.mrb[0].mxu0
        %1209 = vmatprep.mubr.f32.mxu0 0.0
        %1210 = vmatmul.mubr.f32.gmra.mrb[0].mxu0 %v989
        %v1211 = vpop.f32.mrb[0].mxu0
        %v1212 = vadd.f32 0.0, %v1211
        %v1213 = vpop.f32.mrb[0].mxu0
        %1214 = vmatprep.mubr.f32.mxu0 0.0
        %1215 = vmatmul.mubr.f32.gmra.mrb[0].mxu0 %v990
        %v1216 = vpop.f32.mrb[0].mxu0
        %v1217 = vadd.f32 0.0, %v1216
        %v1218 = vpop.f32.mrb[0].mxu0
        %1219 = vmatprep.mubr.f32.mxu0 0.0
        %1220 = vmatmul.mubr.f32.gmra.mrb[0].mxu0 %v991
        %v1221 = vpop.f32.mrb[0].mxu0
        %v1222 = vadd.f32 0.0, %v1221
        %v1223 = vpop.f32.mrb[0].mxu0
        %1224 = vmatprep.mubr.f32.mxu0 0.0
        %1225 = vmatmul.mubr.f32.gmra.mrb[0].mxu0 %v992
        %v1226 = vpop.f32.mrb[0].mxu0
        %v1227 = vadd.f32 0.0, %v1226
        %v1228 = vpop.f32.mrb[0].mxu0
        %1229 = vmatprep.mubr.f32.mxu0 0.0
        %1230 = vmatmul.mubr.f32.gmra.mrb[0].mxu0 %v993
        %v1231 = vpop.f32.mrb[0].mxu0
        %v1232 = vadd.f32 0.0, %v1231
        %v1233 = vpop.f32.mrb[0].mxu0
        %1234 = vdwg.mxu0
        %v1235 = vld [vmem:[%s3] sm:$0xff]
        %v1236 = vld [vmem:[%s3 + $0x8] sm:$0xff]
        %v1237 = vld [vmem:[%s3 + $0x10] sm:$0xff]
        %v1238 = vld [vmem:[%s3 + $0x18] sm:$0xff]
        %v1239 = vld [vmem:[%s3 + $0x20] sm:$0xff]
        %v1240 = vld [vmem:[%s3 + $0x28] sm:$0xff]
        %v1241 = vld [vmem:[%s3 + $0x30] sm:$0xff]
        %v1242 = vld [vmem:[%s3 + $0x38] sm:$0xff]
        %v1243 = vld [vmem:[%s3 + $0x40] sm:$0xff]
        %v1244 = vld [vmem:[%s3 + $0x48] sm:$0xff]
        %v1245 = vld [vmem:[%s3 + $0x50] sm:$0xff]
        %v1246 = vld [vmem:[%s3 + $0x58] sm:$0xff]
        %v1247 = vld [vmem:[%s3 + $0x60] sm:$0xff]
        %v1248 = vld [vmem:[%s3 + $0x68] sm:$0xff]
        %v1249 = vld [vmem:[%s3 + $0x70] sm:$0xff]
        %v1250 = vld [vmem:[%s3 + $0x78] sm:$0xff]
        %v1251 = vld [vmem:[%s3 + $0x80] sm:$0xff]
        %v1252 = vld [vmem:[%s3 + $0x88] sm:$0xff]
        %v1253 = vld [vmem:[%s3 + $0x90] sm:$0xff]
        %v1254 = vld [vmem:[%s3 + $0x98] sm:$0xff]
        %v1255 = vld [vmem:[%s3 + $0xa0] sm:$0xff]
        %v1256 = vld [vmem:[%s3 + $0xa8] sm:$0xff]
        %v1257 = vld [vmem:[%s3 + $0xb0] sm:$0xff]
        %v1258 = vld [vmem:[%s3 + $0xb8] sm:$0xff]
        %v1259 = vld [vmem:[%s3 + $0xc0] sm:$0xff]
        %v1260 = vld [vmem:[%s3 + $0xc8] sm:$0xff]
        %v1261 = vld [vmem:[%s3 + $0xd0] sm:$0xff]
        %v1262 = vld [vmem:[%s3 + $0xd8] sm:$0xff]
        %v1263 = vld [vmem:[%s3 + $0xe0] sm:$0xff]
        %v1264 = vld [vmem:[%s3 + $0xe8] sm:$0xff]
        %v1265 = vld [vmem:[%s3 + $0xf0] sm:$0xff]
        %v1266 = vld [vmem:[%s3 + $0xf8] sm:$0xff]
        %v1267 = vld [vmem:[%s381] sm:$0xff]
        %v1268 = vld [vmem:[%s381 + $0x8] sm:$0xff]
        %v1269 = vld [vmem:[%s381 + $0x10] sm:$0xff]
        %v1270 = vld [vmem:[%s381 + $0x18] sm:$0xff]
        %v1271 = vld [vmem:[%s381 + $0x20] sm:$0xff]
        %v1272 = vld [vmem:[%s381 + $0x28] sm:$0xff]
        %v1273 = vld [vmem:[%s381 + $0x30] sm:$0xff]
        %v1274 = vld [vmem:[%s381 + $0x38] sm:$0xff]
        %v1275 = vld [vmem:[%s381 + $0x40] sm:$0xff]
        %v1276 = vld [vmem:[%s381 + $0x48] sm:$0xff]
        %v1277 = vld [vmem:[%s381 + $0x50] sm:$0xff]
        %v1278 = vld [vmem:[%s381 + $0x58] sm:$0xff]
        %v1279 = vld [vmem:[%s381 + $0x60] sm:$0xff]
        %v1280 = vld [vmem:[%s381 + $0x68] sm:$0xff]
        %v1281 = vld [vmem:[%s381 + $0x70] sm:$0xff]
        %v1282 = vld [vmem:[%s381 + $0x78] sm:$0xff]
        %v1283 = vld [vmem:[%s381 + $0x80] sm:$0xff]
        %v1284 = vld [vmem:[%s381 + $0x88] sm:$0xff]
        %v1285 = vld [vmem:[%s381 + $0x90] sm:$0xff]
        %v1286 = vld [vmem:[%s381 + $0x98] sm:$0xff]
        %v1287 = vld [vmem:[%s381 + $0xa0] sm:$0xff]
        %v1288 = vld [vmem:[%s381 + $0xa8] sm:$0xff]
        %v1289 = vld [vmem:[%s381 + $0xb0] sm:$0xff]
        %v1290 = vld [vmem:[%s381 + $0xb8] sm:$0xff]
        %v1291 = vld [vmem:[%s381 + $0xc0] sm:$0xff]
        %v1292 = vld [vmem:[%s381 + $0xc8] sm:$0xff]
        %v1293 = vld [vmem:[%s381 + $0xd0] sm:$0xff]
        %v1294 = vld [vmem:[%s381 + $0xd8] sm:$0xff]
        %v1295 = vld [vmem:[%s381 + $0xe0] sm:$0xff]
        %v1296 = vld [vmem:[%s381 + $0xe8] sm:$0xff]
        %v1297 = vld [vmem:[%s381 + $0xf0] sm:$0xff]
        %v1298 = vld [vmem:[%s381 + $0xf8] sm:$0xff]
        %v1299 = vld [vmem:[%s4] sm:$0x3f]
        %v1300 = vld [vmem:[%s4 + $0x8] sm:$0x3f]
        %vm1301 = vcmask 48128
        %v1303 = vsel %vm1301, %v1267, 0
        %v1306 = vsel %vm1301, %v1268, 0
        %v1309 = vsel %vm1301, %v1269, 0
        %v1312 = vsel %vm1301, %v1270, 0
        %v1315 = vsel %vm1301, %v1271, 0
        %v1318 = vsel %vm1301, %v1272, 0
        %v1321 = vsel %vm1301, %v1273, 0
        %v1324 = vsel %vm1301, %v1274, 0
        %v1327 = vsel %vm1301, %v1275, 0
        %v1330 = vsel %vm1301, %v1276, 0
        %v1333 = vsel %vm1301, %v1277, 0
        %v1336 = vsel %vm1301, %v1278, 0
        %v1339 = vsel %vm1301, %v1279, 0
        %v1342 = vsel %vm1301, %v1280, 0
        %v1345 = vsel %vm1301, %v1281, 0
        %v1348 = vsel %vm1301, %v1282, 0
        %v1351 = vsel %vm1301, %v1283, 0
        %v1354 = vsel %vm1301, %v1284, 0
        %v1357 = vsel %vm1301, %v1285, 0
        %v1360 = vsel %vm1301, %v1286, 0
        %v1363 = vsel %vm1301, %v1287, 0
        %v1366 = vsel %vm1301, %v1288, 0
        %v1369 = vsel %vm1301, %v1289, 0
        %v1372 = vsel %vm1301, %v1290, 0
        %v1375 = vsel %vm1301, %v1291, 0
        %v1378 = vsel %vm1301, %v1292, 0
        %v1381 = vsel %vm1301, %v1293, 0
        %v1384 = vsel %vm1301, %v1294, 0
        %v1387 = vsel %vm1301, %v1295, 0
        %v1390 = vsel %vm1301, %v1296, 0
        %v1393 = vsel %vm1301, %v1297, 0
        %v1396 = vsel %vm1301, %v1298, 0
        %vm1398 = vcmask 1045504
        %v1400 = vsel %vm1398, %v1299, 0
        %v1403 = vsel %vm1398, %v1300, 0
        %1405 = vmatprep.subr.mxu0 %v1403
        %1406 = vmatpush1.msra.mxu0 %v1400
        %1407 = vmatprep.subr.mxu0 0.0
        %1408 = vmatpush1.msra.mxu0 0.0
        %1409 = vmatprep.subr.mxu0 0.0
        %1410 = vmatpush1.msra.mxu0 0.0
        %1411 = vmatprep.subr.mxu0 0.0
        %1412 = vmatpush1.msra.mxu0 0.0
        %1413 = vmatprep.subr.mxu0 0.0
        %1414 = vmatpush1.msra.mxu0 0.0
        %1415 = vmatprep.subr.mxu0 0.0
        %1416 = vmatpush1.msra.mxu0 0.0
        %1417 = vmatprep.subr.mxu0 0.0
        %1418 = vmatpush1.msra.mxu0 0.0
        %1419 = vmatprep.subr.mxu0 0.0
        %1420 = vmatpush1.msra.mxu0 0.0
        %1421 = vmatprep.subr.mxu0 0.0
        %1422 = vmatpush1.msra.mxu0 0.0
        %1423 = vmatprep.subr.mxu0 0.0
        %1424 = vmatpush1.msra.mxu0 0.0
        %1425 = vmatprep.subr.mxu0 0.0
        %1426 = vmatpush1.msra.mxu0 0.0
        %1427 = vmatprep.subr.mxu0 0.0
        %1428 = vmatpush1.msra.mxu0 0.0
        %1429 = vmatprep.subr.mxu0 0.0
        %1430 = vmatpush1.msra.mxu0 0.0
        %1431 = vmatprep.subr.mxu0 0.0
        %1432 = vmatpush1.msra.mxu0 0.0
        %1433 = vmatprep.subr.mxu0 0.0
        %1434 = vmatpush1.msra.mxu0 0.0
        %1435 = vmatprep.subr.mxu0 0.0
        %1436 = vmatpush1.msra.mxu0 0.0
        %1437 = vmatprep.subr.mxu0 0.0
        %1438 = vmatpush1.msra.mxu0 0.0
        %1439 = vmatprep.subr.mxu0 0.0
        %1440 = vmatpush1.msra.mxu0 0.0
        %1441 = vmatprep.subr.mxu0 0.0
        %1442 = vmatpush1.msra.mxu0 0.0
        %1443 = vmatprep.subr.mxu0 0.0
        %1444 = vmatpush1.msra.mxu0 0.0
        %1445 = vmatprep.subr.mxu0 0.0
        %1446 = vmatpush1.msra.mxu0 0.0
        %1447 = vmatprep.subr.mxu0 0.0
        %1448 = vmatpush1.msra.mxu0 0.0
        %1449 = vmatprep.subr.mxu0 0.0
        %1450 = vmatpush1.msra.mxu0 0.0
        %1451 = vmatprep.subr.mxu0 0.0
        %1452 = vmatpush1.msra.mxu0 0.0
        %1453 = vmatprep.subr.mxu0 0.0
        %1454 = vmatpush1.msra.mxu0 0.0
        %1455 = vmatprep.subr.mxu0 0.0
        %1456 = vmatpush1.msra.mxu0 0.0
        %1457 = vmatprep.subr.mxu0 0.0
        %1458 = vmatpush1.msra.mxu0 0.0
        %1459 = vmatprep.subr.mxu0 0.0
        %1460 = vmatpush1.msra.mxu0 0.0
        %1461 = vmatprep.subr.mxu0 0.0
        %1462 = vmatpush1.msra.mxu0 0.0
        %1463 = vmatprep.subr.mxu0 0.0
        %1464 = vmatpush1.msra.mxu0 0.0
        %1465 = vmatprep.subr.mxu0 0.0
        %1466 = vmatpush1.msra.mxu0 0.0
        %1467 = vmatprep.subr.mxu0 0.0
        %1468 = vmatpush1.msra.mxu0 0.0
        %1469 = vmatprep.mubr.f32.mxu0 0.0
        %1470 = vmatmul.mubr.f32.gmra.mrb[0].mxu0 %v1303
        %v1471 = vpop.f32.mrb[0].mxu0
        %v1472 = vadd.f32 0.0, %v1471
        %v1473 = vpop.f32.mrb[0].mxu0
        %v1474 = vadd.f32 0.0, %v1473
        %1475 = vmatprep.mubr.f32.mxu0 0.0
        %1476 = vmatmul.mubr.f32.gmra.mrb[0].mxu0 %v1306
        %v1477 = vpop.f32.mrb[0].mxu0
        %v1478 = vadd.f32 0.0, %v1477
        %v1479 = vpop.f32.mrb[0].mxu0
        %v1480 = vadd.f32 0.0, %v1479
        %1481 = vmatprep.mubr.f32.mxu0 0.0
        %1482 = vmatmul.mubr.f32.gmra.mrb[0].mxu0 %v1309
        %v1483 = vpop.f32.mrb[0].mxu0
        %v1484 = vadd.f32 0.0, %v1483
        %v1485 = vpop.f32.mrb[0].mxu0
        %v1486 = vadd.f32 0.0, %v1485
        %1487 = vmatprep.mubr.f32.mxu0 0.0
        %1488 = vmatmul.mubr.f32.gmra.mrb[0].mxu0 %v1312
        %v1489 = vpop.f32.mrb[0].mxu0
        %v1490 = vadd.f32 0.0, %v1489
        %v1491 = vpop.f32.mrb[0].mxu0
        %v1492 = vadd.f32 0.0, %v1491
        %1493 = vmatprep.mubr.f32.mxu0 0.0
        %1494 = vmatmul.mubr.f32.gmra.mrb[0].mxu0 %v1315
        %v1495 = vpop.f32.mrb[0].mxu0
        %v1496 = vadd.f32 0.0, %v1495
        %v1497 = vpop.f32.mrb[0].mxu0
        %v1498 = vadd.f32 0.0, %v1497
        %1499 = vmatprep.mubr.f32.mxu0 0.0
        %1500 = vmatmul.mubr.f32.gmra.mrb[0].mxu0 %v1318
        %v1501 = vpop.f32.mrb[0].mxu0
        %v1502 = vadd.f32 0.0, %v1501
        %v1503 = vpop.f32.mrb[0].mxu0
        %v1504 = vadd.f32 0.0, %v1503
        %1505 = vmatprep.mubr.f32.mxu0 0.0
        %1506 = vmatmul.mubr.f32.gmra.mrb[0].mxu0 %v1321
        %v1507 = vpop.f32.mrb[0].mxu0
        %v1508 = vadd.f32 0.0, %v1507
        %v1509 = vpop.f32.mrb[0].mxu0
        %v1510 = vadd.f32 0.0, %v1509
        %1511 = vmatprep.mubr.f32.mxu0 0.0
        %1512 = vmatmul.mubr.f32.gmra.mrb[0].mxu0 %v1324
        %v1513 = vpop.f32.mrb[0].mxu0
        %v1514 = vadd.f32 0.0, %v1513
        %v1515 = vpop.f32.mrb[0].mxu0
        %v1516 = vadd.f32 0.0, %v1515
        %1517 = vmatprep.mubr.f32.mxu0 0.0
        %1518 = vmatmul.mubr.f32.gmra.mrb[0].mxu0 %v1327
        %v1519 = vpop.f32.mrb[0].mxu0
        %v1520 = vadd.f32 0.0, %v1519
        %v1521 = vpop.f32.mrb[0].mxu0
        %v1522 = vadd.f32 0.0, %v1521
        %1523 = vmatprep.mubr.f32.mxu0 0.0
        %1524 = vmatmul.mubr.f32.gmra.mrb[0].mxu0 %v1330
        %v1525 = vpop.f32.mrb[0].mxu0
        %v1526 = vadd.f32 0.0, %v1525
        %v1527 = vpop.f32.mrb[0].mxu0
        %v1528 = vadd.f32 0.0, %v1527
        %1529 = vmatprep.mubr.f32.mxu0 0.0
        %1530 = vmatmul.mubr.f32.gmra.mrb[0].mxu0 %v1333
        %v1531 = vpop.f32.mrb[0].mxu0
        %v1532 = vadd.f32 0.0, %v1531
        %v1533 = vpop.f32.mrb[0].mxu0
        %v1534 = vadd.f32 0.0, %v1533
        %1535 = vmatprep.mubr.f32.mxu0 0.0
        %1536 = vmatmul.mubr.f32.gmra.mrb[0].mxu0 %v1336
        %v1537 = vpop.f32.mrb[0].mxu0
        %v1538 = vadd.f32 0.0, %v1537
        %v1539 = vpop.f32.mrb[0].mxu0
        %v1540 = vadd.f32 0.0, %v1539
        %1541 = vmatprep.mubr.f32.mxu0 0.0
        %1542 = vmatmul.mubr.f32.gmra.mrb[0].mxu0 %v1339
        %v1543 = vpop.f32.mrb[0].mxu0
        %v1544 = vadd.f32 0.0, %v1543
        %v1545 = vpop.f32.mrb[0].mxu0
        %v1546 = vadd.f32 0.0, %v1545
        %1547 = vmatprep.mubr.f32.mxu0 0.0
        %1548 = vmatmul.mubr.f32.gmra.mrb[0].mxu0 %v1342
        %v1549 = vpop.f32.mrb[0].mxu0
        %v1550 = vadd.f32 0.0, %v1549
        %v1551 = vpop.f32.mrb[0].mxu0
        %v1552 = vadd.f32 0.0, %v1551
        %1553 = vmatprep.mubr.f32.mxu0 0.0
        %1554 = vmatmul.mubr.f32.gmra.mrb[0].mxu0 %v1345
        %v1555 = vpop.f32.mrb[0].mxu0
        %v1556 = vadd.f32 0.0, %v1555
        %v1557 = vpop.f32.mrb[0].mxu0
        %v1558 = vadd.f32 0.0, %v1557
        %1559 = vmatprep.mubr.f32.mxu0 0.0
        %1560 = vmatmul.mubr.f32.gmra.mrb[0].mxu0 %v1348
        %v1561 = vpop.f32.mrb[0].mxu0
        %v1562 = vadd.f32 0.0, %v1561
        %v1563 = vpop.f32.mrb[0].mxu0
        %v1564 = vadd.f32 0.0, %v1563
        %1565 = vmatprep.mubr.f32.mxu0 0.0
        %1566 = vmatmul.mubr.f32.gmra.mrb[0].mxu0 %v1351
        %v1567 = vpop.f32.mrb[0].mxu0
        %v1568 = vadd.f32 0.0, %v1567
        %v1569 = vpop.f32.mrb[0].mxu0
        %v1570 = vadd.f32 0.0, %v1569
        %1571 = vmatprep.mubr.f32.mxu0 0.0
        %1572 = vmatmul.mubr.f32.gmra.mrb[0].mxu0 %v1354
        %v1573 = vpop.f32.mrb[0].mxu0
        %v1574 = vadd.f32 0.0, %v1573
        %v1575 = vpop.f32.mrb[0].mxu0
        %v1576 = vadd.f32 0.0, %v1575
        %1577 = vmatprep.mubr.f32.mxu0 0.0
        %1578 = vmatmul.mubr.f32.gmra.mrb[0].mxu0 %v1357
        %v1579 = vpop.f32.mrb[0].mxu0
        %v1580 = vadd.f32 0.0, %v1579
        %v1581 = vpop.f32.mrb[0].mxu0
        %v1582 = vadd.f32 0.0, %v1581
        %1583 = vmatprep.mubr.f32.mxu0 0.0
        %1584 = vmatmul.mubr.f32.gmra.mrb[0].mxu0 %v1360
        %v1585 = vpop.f32.mrb[0].mxu0
        %v1586 = vadd.f32 0.0, %v1585
        %v1587 = vpop.f32.mrb[0].mxu0
        %v1588 = vadd.f32 0.0, %v1587
        %1589 = vmatprep.mubr.f32.mxu0 0.0
        %1590 = vmatmul.mubr.f32.gmra.mrb[0].mxu0 %v1363
        %v1591 = vpop.f32.mrb[0].mxu0
        %v1592 = vadd.f32 0.0, %v1591
        %v1593 = vpop.f32.mrb[0].mxu0
        %v1594 = vadd.f32 0.0, %v1593
        %1595 = vmatprep.mubr.f32.mxu0 0.0
        %1596 = vmatmul.mubr.f32.gmra.mrb[0].mxu0 %v1366
        %v1597 = vpop.f32.mrb[0].mxu0
        %v1598 = vadd.f32 0.0, %v1597
        %v1599 = vpop.f32.mrb[0].mxu0
        %v1600 = vadd.f32 0.0, %v1599
        %1601 = vmatprep.mubr.f32.mxu0 0.0
        %1602 = vmatmul.mubr.f32.gmra.mrb[0].mxu0 %v1369
        %v1603 = vpop.f32.mrb[0].mxu0
        %v1604 = vadd.f32 0.0, %v1603
        %v1605 = vpop.f32.mrb[0].mxu0
        %v1606 = vadd.f32 0.0, %v1605
        %1607 = vmatprep.mubr.f32.mxu0 0.0
        %1608 = vmatmul.mubr.f32.gmra.mrb[0].mxu0 %v1372
        %v1609 = vpop.f32.mrb[0].mxu0
        %v1610 = vadd.f32 0.0, %v1609
        %v1611 = vpop.f32.mrb[0].mxu0
        %v1612 = vadd.f32 0.0, %v1611
        %1613 = vmatprep.mubr.f32.mxu0 0.0
        %1614 = vmatmul.mubr.f32.gmra.mrb[0].mxu0 %v1375
        %v1615 = vpop.f32.mrb[0].mxu0
        %v1616 = vadd.f32 0.0, %v1615
        %v1617 = vpop.f32.mrb[0].mxu0
        %v1618 = vadd.f32 0.0, %v1617
        %1619 = vmatprep.mubr.f32.mxu0 0.0
        %1620 = vmatmul.mubr.f32.gmra.mrb[0].mxu0 %v1378
        %v1621 = vpop.f32.mrb[0].mxu0
        %v1622 = vadd.f32 0.0, %v1621
        %v1623 = vpop.f32.mrb[0].mxu0
        %v1624 = vadd.f32 0.0, %v1623
        %1625 = vmatprep.mubr.f32.mxu0 0.0
        %1626 = vmatmul.mubr.f32.gmra.mrb[0].mxu0 %v1381
        %v1627 = vpop.f32.mrb[0].mxu0
        %v1628 = vadd.f32 0.0, %v1627
        %v1629 = vpop.f32.mrb[0].mxu0
        %v1630 = vadd.f32 0.0, %v1629
        %1631 = vmatprep.mubr.f32.mxu0 0.0
        %1632 = vmatmul.mubr.f32.gmra.mrb[0].mxu0 %v1384
        %v1633 = vpop.f32.mrb[0].mxu0
        %v1634 = vadd.f32 0.0, %v1633
        %v1635 = vpop.f32.mrb[0].mxu0
        %v1636 = vadd.f32 0.0, %v1635
        %1637 = vmatprep.mubr.f32.mxu0 0.0
        %1638 = vmatmul.mubr.f32.gmra.mrb[0].mxu0 %v1387
        %v1639 = vpop.f32.mrb[0].mxu0
        %v1640 = vadd.f32 0.0, %v1639
        %v1641 = vpop.f32.mrb[0].mxu0
        %v1642 = vadd.f32 0.0, %v1641
        %1643 = vmatprep.mubr.f32.mxu0 0.0
        %1644 = vmatmul.mubr.f32.gmra.mrb[0].mxu0 %v1390
        %v1645 = vpop.f32.mrb[0].mxu0
        %v1646 = vadd.f32 0.0, %v1645
        %v1647 = vpop.f32.mrb[0].mxu0
        %v1648 = vadd.f32 0.0, %v1647
        %1649 = vmatprep.mubr.f32.mxu0 0.0
        %1650 = vmatmul.mubr.f32.gmra.mrb[0].mxu0 %v1393
        %v1651 = vpop.f32.mrb[0].mxu0
        %v1652 = vadd.f32 0.0, %v1651
        %v1653 = vpop.f32.mrb[0].mxu0
        %v1654 = vadd.f32 0.0, %v1653
        %1655 = vmatprep.mubr.f32.mxu0 0.0
        %1656 = vmatmul.mubr.f32.gmra.mrb[0].mxu0 %v1396
        %v1657 = vpop.f32.mrb[0].mxu0
        %v1658 = vadd.f32 0.0, %v1657
        %v1659 = vpop.f32.mrb[0].mxu0
        %v1660 = vadd.f32 0.0, %v1659
        %1661 = vdwg.mxu0
        %1662 = vmatprep.subr.mxu0 %v1236
        %1663 = vmatpush1.msra.mxu0 %v1235
        %1664 = vmatprep.subr.mxu0 %v1238
        %1665 = vmatpush1.msra.mxu0 %v1237
        %1666 = vmatprep.subr.mxu0 %v1240
        %1667 = vmatpush1.msra.mxu0 %v1239
        %1668 = vmatprep.subr.mxu0 %v1242
        %1669 = vmatpush1.msra.mxu0 %v1241
        %1670 = vmatprep.subr.mxu0 %v1244
        %1671 = vmatpush1.msra.mxu0 %v1243
        %1672 = vmatprep.subr.mxu0 %v1246
        %1673 = vmatpush1.msra.mxu0 %v1245
        %1674 = vmatprep.subr.mxu0 %v1248
        %1675 = vmatpush1.msra.mxu0 %v1247
        %1676 = vmatprep.subr.mxu0 %v1250
        %1677 = vmatpush1.msra.mxu0 %v1249
        %1678 = vmatprep.subr.mxu0 %v1252
        %1679 = vmatpush1.msra.mxu0 %v1251
        %1680 = vmatprep.subr.mxu0 %v1254
        %1681 = vmatpush1.msra.mxu0 %v1253
        %1682 = vmatprep.subr.mxu0 %v1256
        %1683 = vmatpush1.msra.mxu0 %v1255
        %1684 = vmatprep.subr.mxu0 %v1258
        %1685 = vmatpush1.msra.mxu0 %v1257
        %1686 = vmatprep.subr.mxu0 %v1260
        %1687 = vmatpush1.msra.mxu0 %v1259
        %1688 = vmatprep.subr.mxu0 %v1262
        %1689 = vmatpush1.msra.mxu0 %v1261
        %1690 = vmatprep.subr.mxu0 %v1264
        %1691 = vmatpush1.msra.mxu0 %v1263
        %1692 = vmatprep.subr.mxu0 %v1266
        %1693 = vmatpush1.msra.mxu0 %v1265
        %1694 = vmatprep.subr.mxu0 0.0
        %1695 = vmatpush1.msra.mxu0 0.0
        %1696 = vmatprep.subr.mxu0 0.0
        %1697 = vmatpush1.msra.mxu0 0.0
        %1698 = vmatprep.subr.mxu0 0.0
        %1699 = vmatpush1.msra.mxu0 0.0
        %1700 = vmatprep.subr.mxu0 0.0
        %1701 = vmatpush1.msra.mxu0 0.0
        %1702 = vmatprep.subr.mxu0 0.0
        %1703 = vmatpush1.msra.mxu0 0.0
        %1704 = vmatprep.subr.mxu0 0.0
        %1705 = vmatpush1.msra.mxu0 0.0
        %1706 = vmatprep.subr.mxu0 0.0
        %1707 = vmatpush1.msra.mxu0 0.0
        %1708 = vmatprep.subr.mxu0 0.0
        %1709 = vmatpush1.msra.mxu0 0.0
        %1710 = vmatprep.subr.mxu0 0.0
        %1711 = vmatpush1.msra.mxu0 0.0
        %1712 = vmatprep.subr.mxu0 0.0
        %1713 = vmatpush1.msra.mxu0 0.0
        %1714 = vmatprep.subr.mxu0 0.0
        %1715 = vmatpush1.msra.mxu0 0.0
        %1716 = vmatprep.subr.mxu0 0.0
        %1717 = vmatpush1.msra.mxu0 0.0
        %1718 = vmatprep.subr.mxu0 0.0
        %1719 = vmatpush1.msra.mxu0 0.0
        %1720 = vmatprep.subr.mxu0 0.0
        %1721 = vmatpush1.msra.mxu0 0.0
        %1722 = vmatprep.subr.mxu0 0.0
        %1723 = vmatpush1.msra.mxu0 0.0
        %1724 = vmatprep.subr.mxu0 0.0
        %1725 = vmatpush1.msra.mxu0 0.0
        %1726 = vmatprep.mubr.f32.mxu0 0.0
        %1727 = vmatmul.mubr.f32.gmra.mrb[0].mxu0 %v1077
        %v1728 = vpop.f32.mrb[0].mxu0
        %v1729 = vadd.f32 %v1472, %v1728
        %v1730 = vpop.f32.mrb[0].mxu0
        %v1731 = vadd.f32 %v1474, %v1730
        %1732 = vmatprep.mubr.f32.mxu0 0.0
        %1733 = vmatmul.mubr.f32.gmra.mrb[0].mxu0 %v1082
        %v1734 = vpop.f32.mrb[0].mxu0
        %v1735 = vadd.f32 %v1478, %v1734
        %v1736 = vpop.f32.mrb[0].mxu0
        %v1737 = vadd.f32 %v1480, %v1736
        %1738 = vmatprep.mubr.f32.mxu0 0.0
        %1739 = vmatmul.mubr.f32.gmra.mrb[0].mxu0 %v1087
        %v1740 = vpop.f32.mrb[0].mxu0
        %v1741 = vadd.f32 %v1484, %v1740
        %v1742 = vpop.f32.mrb[0].mxu0
        %v1743 = vadd.f32 %v1486, %v1742
        %1744 = vmatprep.mubr.f32.mxu0 0.0
        %1745 = vmatmul.mubr.f32.gmra.mrb[0].mxu0 %v1092
        %v1746 = vpop.f32.mrb[0].mxu0
        %v1747 = vadd.f32 %v1490, %v1746
        %v1748 = vpop.f32.mrb[0].mxu0
        %v1749 = vadd.f32 %v1492, %v1748
        %1750 = vmatprep.mubr.f32.mxu0 0.0
        %1751 = vmatmul.mubr.f32.gmra.mrb[0].mxu0 %v1097
        %v1752 = vpop.f32.mrb[0].mxu0
        %v1753 = vadd.f32 %v1496, %v1752
        %v1754 = vpop.f32.mrb[0].mxu0
        %v1755 = vadd.f32 %v1498, %v1754
        %1756 = vmatprep.mubr.f32.mxu0 0.0
        %1757 = vmatmul.mubr.f32.gmra.mrb[0].mxu0 %v1102
        %v1758 = vpop.f32.mrb[0].mxu0
        %v1759 = vadd.f32 %v1502, %v1758
        %v1760 = vpop.f32.mrb[0].mxu0
        %v1761 = vadd.f32 %v1504, %v1760
        %1762 = vmatprep.mubr.f32.mxu0 0.0
        %1763 = vmatmul.mubr.f32.gmra.mrb[0].mxu0 %v1107
        %v1764 = vpop.f32.mrb[0].mxu0
        %v1765 = vadd.f32 %v1508, %v1764
        %v1766 = vpop.f32.mrb[0].mxu0
        %v1767 = vadd.f32 %v1510, %v1766
        %1768 = vmatprep.mubr.f32.mxu0 0.0
        %1769 = vmatmul.mubr.f32.gmra.mrb[0].mxu0 %v1112
        %v1770 = vpop.f32.mrb[0].mxu0
        %v1771 = vadd.f32 %v1514, %v1770
        %v1772 = vpop.f32.mrb[0].mxu0
        %v1773 = vadd.f32 %v1516, %v1772
        %1774 = vmatprep.mubr.f32.mxu0 0.0
        %1775 = vmatmul.mubr.f32.gmra.mrb[0].mxu0 %v1117
        %v1776 = vpop.f32.mrb[0].mxu0
        %v1777 = vadd.f32 %v1520, %v1776
        %v1778 = vpop.f32.mrb[0].mxu0
        %v1779 = vadd.f32 %v1522, %v1778
        %1780 = vmatprep.mubr.f32.mxu0 0.0
        %1781 = vmatmul.mubr.f32.gmra.mrb[0].mxu0 %v1122
        %v1782 = vpop.f32.mrb[0].mxu0
        %v1783 = vadd.f32 %v1526, %v1782
        %v1784 = vpop.f32.mrb[0].mxu0
        %v1785 = vadd.f32 %v1528, %v1784
        %1786 = vmatprep.mubr.f32.mxu0 0.0
        %1787 = vmatmul.mubr.f32.gmra.mrb[0].mxu0 %v1127
        %v1788 = vpop.f32.mrb[0].mxu0
        %v1789 = vadd.f32 %v1532, %v1788
        %v1790 = vpop.f32.mrb[0].mxu0
        %v1791 = vadd.f32 %v1534, %v1790
        %1792 = vmatprep.mubr.f32.mxu0 0.0
        %1793 = vmatmul.mubr.f32.gmra.mrb[0].mxu0 %v1132
        %v1794 = vpop.f32.mrb[0].mxu0
        %v1795 = vadd.f32 %v1538, %v1794
        %v1796 = vpop.f32.mrb[0].mxu0
        %v1797 = vadd.f32 %v1540, %v1796
        %1798 = vmatprep.mubr.f32.mxu0 0.0
        %1799 = vmatmul.mubr.f32.gmra.mrb[0].mxu0 %v1137
        %v1800 = vpop.f32.mrb[0].mxu0
        %v1801 = vadd.f32 %v1544, %v1800
        %v1802 = vpop.f32.mrb[0].mxu0
        %v1803 = vadd.f32 %v1546, %v1802
        %1804 = vmatprep.mubr.f32.mxu0 0.0
        %1805 = vmatmul.mubr.f32.gmra.mrb[0].mxu0 %v1142
        %v1806 = vpop.f32.mrb[0].mxu0
        %v1807 = vadd.f32 %v1550, %v1806
        %v1808 = vpop.f32.mrb[0].mxu0
        %v1809 = vadd.f32 %v1552, %v1808
        %1810 = vmatprep.mubr.f32.mxu0 0.0
        %1811 = vmatmul.mubr.f32.gmra.mrb[0].mxu0 %v1147
        %v1812 = vpop.f32.mrb[0].mxu0
        %v1813 = vadd.f32 %v1556, %v1812
        %v1814 = vpop.f32.mrb[0].mxu0
        %v1815 = vadd.f32 %v1558, %v1814
        %1816 = vmatprep.mubr.f32.mxu0 0.0
        %1817 = vmatmul.mubr.f32.gmra.mrb[0].mxu0 %v1152
        %v1818 = vpop.f32.mrb[0].mxu0
        %v1819 = vadd.f32 %v1562, %v1818
        %v1820 = vpop.f32.mrb[0].mxu0
        %v1821 = vadd.f32 %v1564, %v1820
        %1822 = vmatprep.mubr.f32.mxu0 0.0
        %1823 = vmatmul.mubr.f32.gmra.mrb[0].mxu0 %v1157
        %v1824 = vpop.f32.mrb[0].mxu0
        %v1825 = vadd.f32 %v1568, %v1824
        %v1826 = vpop.f32.mrb[0].mxu0
        %v1827 = vadd.f32 %v1570, %v1826
        %1828 = vmatprep.mubr.f32.mxu0 0.0
        %1829 = vmatmul.mubr.f32.gmra.mrb[0].mxu0 %v1162
        %v1830 = vpop.f32.mrb[0].mxu0
        %v1831 = vadd.f32 %v1574, %v1830
        %v1832 = vpop.f32.mrb[0].mxu0
        %v1833 = vadd.f32 %v1576, %v1832
        %1834 = vmatprep.mubr.f32.mxu0 0.0
        %1835 = vmatmul.mubr.f32.gmra.mrb[0].mxu0 %v1167
        %v1836 = vpop.f32.mrb[0].mxu0
        %v1837 = vadd.f32 %v1580, %v1836
        %v1838 = vpop.f32.mrb[0].mxu0
        %v1839 = vadd.f32 %v1582, %v1838
        %1840 = vmatprep.mubr.f32.mxu0 0.0
        %1841 = vmatmul.mubr.f32.gmra.mrb[0].mxu0 %v1172
        %v1842 = vpop.f32.mrb[0].mxu0
        %v1843 = vadd.f32 %v1586, %v1842
        %v1844 = vpop.f32.mrb[0].mxu0
        %v1845 = vadd.f32 %v1588, %v1844
        %1846 = vmatprep.mubr.f32.mxu0 0.0
        %1847 = vmatmul.mubr.f32.gmra.mrb[0].mxu0 %v1177
        %v1848 = vpop.f32.mrb[0].mxu0
        %v1849 = vadd.f32 %v1592, %v1848
        %v1850 = vpop.f32.mrb[0].mxu0
        %v1851 = vadd.f32 %v1594, %v1850
        %1852 = vmatprep.mubr.f32.mxu0 0.0
        %1853 = vmatmul.mubr.f32.gmra.mrb[0].mxu0 %v1182
        %v1854 = vpop.f32.mrb[0].mxu0
        %v1855 = vadd.f32 %v1598, %v1854
        %v1856 = vpop.f32.mrb[0].mxu0
        %v1857 = vadd.f32 %v1600, %v1856
        %1858 = vmatprep.mubr.f32.mxu0 0.0
        %1859 = vmatmul.mubr.f32.gmra.mrb[0].mxu0 %v1187
        %v1860 = vpop.f32.mrb[0].mxu0
        %v1861 = vadd.f32 %v1604, %v1860
        %v1862 = vpop.f32.mrb[0].mxu0
        %v1863 = vadd.f32 %v1606, %v1862
        %1864 = vmatprep.mubr.f32.mxu0 0.0
        %1865 = vmatmul.mubr.f32.gmra.mrb[0].mxu0 %v1192
        %v1866 = vpop.f32.mrb[0].mxu0
        %v1867 = vadd.f32 %v1610, %v1866
        %v1868 = vpop.f32.mrb[0].mxu0
        %v1869 = vadd.f32 %v1612, %v1868
        %1870 = vmatprep.mubr.f32.mxu0 0.0
        %1871 = vmatmul.mubr.f32.gmra.mrb[0].mxu0 %v1197
        %v1872 = vpop.f32.mrb[0].mxu0
        %v1873 = vadd.f32 %v1616, %v1872
        %v1874 = vpop.f32.mrb[0].mxu0
        %v1875 = vadd.f32 %v1618, %v1874
        %1876 = vmatprep.mubr.f32.mxu0 0.0
        %1877 = vmatmul.mubr.f32.gmra.mrb[0].mxu0 %v1202
        %v1878 = vpop.f32.mrb[0].mxu0
        %v1879 = vadd.f32 %v1622, %v1878
        %v1880 = vpop.f32.mrb[0].mxu0
        %v1881 = vadd.f32 %v1624, %v1880
        %1882 = vmatprep.mubr.f32.mxu0 0.0
        %1883 = vmatmul.mubr.f32.gmra.mrb[0].mxu0 %v1207
        %v1884 = vpop.f32.mrb[0].mxu0
        %v1885 = vadd.f32 %v1628, %v1884
        %v1886 = vpop.f32.mrb[0].mxu0
        %v1887 = vadd.f32 %v1630, %v1886
        %1888 = vmatprep.mubr.f32.mxu0 0.0
        %1889 = vmatmul.mubr.f32.gmra.mrb[0].mxu0 %v1212
        %v1890 = vpop.f32.mrb[0].mxu0
        %v1891 = vadd.f32 %v1634, %v1890
        %v1892 = vpop.f32.mrb[0].mxu0
        %v1893 = vadd.f32 %v1636, %v1892
        %1894 = vmatprep.mubr.f32.mxu0 0.0
        %1895 = vmatmul.mubr.f32.gmra.mrb[0].mxu0 %v1217
        %v1896 = vpop.f32.mrb[0].mxu0
        %v1897 = vadd.f32 %v1640, %v1896
        %v1898 = vpop.f32.mrb[0].mxu0
        %v1899 = vadd.f32 %v1642, %v1898
        %1900 = vmatprep.mubr.f32.mxu0 0.0
        %1901 = vmatmul.mubr.f32.gmra.mrb[0].mxu0 %v1222
        %v1902 = vpop.f32.mrb[0].mxu0
        %v1903 = vadd.f32 %v1646, %v1902
        %v1904 = vpop.f32.mrb[0].mxu0
        %v1905 = vadd.f32 %v1648, %v1904
        %1906 = vmatprep.mubr.f32.mxu0 0.0
        %1907 = vmatmul.mubr.f32.gmra.mrb[0].mxu0 %v1227
        %v1908 = vpop.f32.mrb[0].mxu0
        %v1909 = vadd.f32 %v1652, %v1908
        %v1910 = vpop.f32.mrb[0].mxu0
        %v1911 = vadd.f32 %v1654, %v1910
        %1912 = vmatprep.mubr.f32.mxu0 0.0
        %1913 = vmatmul.mubr.f32.gmra.mrb[0].mxu0 %v1232
        %v1914 = vpop.f32.mrb[0].mxu0
        %v1915 = vadd.f32 %v1658, %v1914
        %v1916 = vpop.f32.mrb[0].mxu0
        %v1917 = vadd.f32 %v1660, %v1916
        %1918 = vdwg.mxu0
        %v1919 = vld [vmem:[%s5] sm:$0x3]
        %v1921 = vlaneseq
        %v1922 = vshrl.u32 %v1921, 7
        %v1923 = vsub.s32 0, %v1922
        %v1924 = vrot.slane %v1919, %v1923
        %v1925 = vlaneseq
        %v1926 = vshrl.u32 %v1925, 7
        %v1927 = vsub.s32 1, %v1926
        %v1928 = vrot.slane %v1919, %v1927
        %v1931 = vadd.f32 %v1729, %v1924
        %v1932 = vadd.f32 %v1731, %v1928
        %v1933 = vadd.f32 %v1735, %v1924
        %v1934 = vadd.f32 %v1737, %v1928
        %v1935 = vadd.f32 %v1741, %v1924
        %v1936 = vadd.f32 %v1743, %v1928
        %v1937 = vadd.f32 %v1747, %v1924
        %v1938 = vadd.f32 %v1749, %v1928
        %v1939 = vadd.f32 %v1753, %v1924
        %v1940 = vadd.f32 %v1755, %v1928
        %v1941 = vadd.f32 %v1759, %v1924
        %v1942 = vadd.f32 %v1761, %v1928
        %v1943 = vadd.f32 %v1765, %v1924
        %v1944 = vadd.f32 %v1767, %v1928
        %v1945 = vadd.f32 %v1771, %v1924
        %v1946 = vadd.f32 %v1773, %v1928
        %v1947 = vadd.f32 %v1777, %v1924
        %v1948 = vadd.f32 %v1779, %v1928
        %v1949 = vadd.f32 %v1783, %v1924
        %v1950 = vadd.f32 %v1785, %v1928
        %v1951 = vadd.f32 %v1789, %v1924
        %v1952 = vadd.f32 %v1791, %v1928
        %v1953 = vadd.f32 %v1795, %v1924
        %v1954 = vadd.f32 %v1797, %v1928
        %v1955 = vadd.f32 %v1801, %v1924
        %v1956 = vadd.f32 %v1803, %v1928
        %v1957 = vadd.f32 %v1807, %v1924
        %v1958 = vadd.f32 %v1809, %v1928
        %v1959 = vadd.f32 %v1813, %v1924
        %v1960 = vadd.f32 %v1815, %v1928
        %v1961 = vadd.f32 %v1819, %v1924
        %v1962 = vadd.f32 %v1821, %v1928
        %v1963 = vadd.f32 %v1825, %v1924
        %v1964 = vadd.f32 %v1827, %v1928
        %v1965 = vadd.f32 %v1831, %v1924
        %v1966 = vadd.f32 %v1833, %v1928
        %v1967 = vadd.f32 %v1837, %v1924
        %v1968 = vadd.f32 %v1839, %v1928
        %v1969 = vadd.f32 %v1843, %v1924
        %v1970 = vadd.f32 %v1845, %v1928
        %v1971 = vadd.f32 %v1849, %v1924
        %v1972 = vadd.f32 %v1851, %v1928
        %v1973 = vadd.f32 %v1855, %v1924
        %v1974 = vadd.f32 %v1857, %v1928
        %v1975 = vadd.f32 %v1861, %v1924
        %v1976 = vadd.f32 %v1863, %v1928
        %v1977 = vadd.f32 %v1867, %v1924
        %v1978 = vadd.f32 %v1869, %v1928
        %v1979 = vadd.f32 %v1873, %v1924
        %v1980 = vadd.f32 %v1875, %v1928
        %v1981 = vadd.f32 %v1879, %v1924
        %v1982 = vadd.f32 %v1881, %v1928
        %v1983 = vadd.f32 %v1885, %v1924
        %v1984 = vadd.f32 %v1887, %v1928
        %v1985 = vadd.f32 %v1891, %v1924
        %v1986 = vadd.f32 %v1893, %v1928
        %v1987 = vadd.f32 %v1897, %v1924
        %v1988 = vadd.f32 %v1899, %v1928
        %v1989 = vadd.f32 %v1903, %v1924
        %v1990 = vadd.f32 %v1905, %v1928
        %v1991 = vadd.f32 %v1909, %v1924
        %v1992 = vadd.f32 %v1911, %v1928
        %v1993 = vadd.f32 %v1915, %v1924
        %v1994 = vadd.f32 %v1917, %v1928
        %v1995 = vmax.f32 %v1931, 0.0
        %v1996 = vmax.f32 %v1932, 0.0
        %v1997 = vmax.f32 %v1933, 0.0
        %v1998 = vmax.f32 %v1934, 0.0
        %v1999 = vmax.f32 %v1935, 0.0
        %v2000 = vmax.f32 %v1936, 0.0
        %v2001 = vmax.f32 %v1937, 0.0
        %v2002 = vmax.f32 %v1938, 0.0
        %v2003 = vmax.f32 %v1939, 0.0
        %v2004 = vmax.f32 %v1940, 0.0
        %v2005 = vmax.f32 %v1941, 0.0
        %v2006 = vmax.f32 %v1942, 0.0
        %v2007 = vmax.f32 %v1943, 0.0
        %v2008 = vmax.f32 %v1944, 0.0
        %v2009 = vmax.f32 %v1945, 0.0
        %v2010 = vmax.f32 %v1946, 0.0
        %v2011 = vmax.f32 %v1947, 0.0
        %v2012 = vmax.f32 %v1948, 0.0
        %v2013 = vmax.f32 %v1949, 0.0
        %v2014 = vmax.f32 %v1950, 0.0
        %v2015 = vmax.f32 %v1951, 0.0
        %v2016 = vmax.f32 %v1952, 0.0
        %v2017 = vmax.f32 %v1953, 0.0
        %v2018 = vmax.f32 %v1954, 0.0
        %v2019 = vmax.f32 %v1955, 0.0
        %v2020 = vmax.f32 %v1956, 0.0
        %v2021 = vmax.f32 %v1957, 0.0
        %v2022 = vmax.f32 %v1958, 0.0
        %v2023 = vmax.f32 %v1959, 0.0
        %v2024 = vmax.f32 %v1960, 0.0
        %v2025 = vmax.f32 %v1961, 0.0
        %v2026 = vmax.f32 %v1962, 0.0
        %v2027 = vmax.f32 %v1963, 0.0
        %v2028 = vmax.f32 %v1964, 0.0
        %v2029 = vmax.f32 %v1965, 0.0
        %v2030 = vmax.f32 %v1966, 0.0
        %v2031 = vmax.f32 %v1967, 0.0
        %v2032 = vmax.f32 %v1968, 0.0
        %v2033 = vmax.f32 %v1969, 0.0
        %v2034 = vmax.f32 %v1970, 0.0
        %v2035 = vmax.f32 %v1971, 0.0
        %v2036 = vmax.f32 %v1972, 0.0
        %v2037 = vmax.f32 %v1973, 0.0
        %v2038 = vmax.f32 %v1974, 0.0
        %v2039 = vmax.f32 %v1975, 0.0
        %v2040 = vmax.f32 %v1976, 0.0
        %v2041 = vmax.f32 %v1977, 0.0
        %v2042 = vmax.f32 %v1978, 0.0
        %v2043 = vmax.f32 %v1979, 0.0
        %v2044 = vmax.f32 %v1980, 0.0
        %v2045 = vmax.f32 %v1981, 0.0
        %v2046 = vmax.f32 %v1982, 0.0
        %v2047 = vmax.f32 %v1983, 0.0
        %v2048 = vmax.f32 %v1984, 0.0
        %v2049 = vmax.f32 %v1985, 0.0
        %v2050 = vmax.f32 %v1986, 0.0
        %v2051 = vmax.f32 %v1987, 0.0
        %v2052 = vmax.f32 %v1988, 0.0
        %v2053 = vmax.f32 %v1989, 0.0
        %v2054 = vmax.f32 %v1990, 0.0
        %v2055 = vmax.f32 %v1991, 0.0
        %v2056 = vmax.f32 %v1992, 0.0
        %v2057 = vmax.f32 %v1993, 0.0
        %v2058 = vmax.f32 %v1994, 0.0
        %v2059 = vld [vmem:[%s6] sm:$0xff]
        %v2060 = vld [vmem:[%s6 + $0x8] sm:$0xff]
        %v2061 = vld [vmem:[%s6 + $0x10] sm:$0xff]
        %v2062 = vld [vmem:[%s6 + $0x18] sm:$0xff]
        %v2063 = vld [vmem:[%s6 + $0x20] sm:$0xff]
        %v2064 = vld [vmem:[%s6 + $0x28] sm:$0xff]
        %v2065 = vld [vmem:[%s6 + $0x30] sm:$0xff]
        %v2066 = vld [vmem:[%s6 + $0x38] sm:$0xff]
        %v2067 = vld [vmem:[%s6 + $0x40] sm:$0xff]
        %v2068 = vld [vmem:[%s6 + $0x48] sm:$0xff]
        %v2069 = vld [vmem:[%s6 + $0x50] sm:$0xff]
        %v2070 = vld [vmem:[%s6 + $0x58] sm:$0xff]
        %v2071 = vld [vmem:[%s6 + $0x60] sm:$0xff]
        %v2072 = vld [vmem:[%s6 + $0x68] sm:$0xff]
        %v2073 = vld [vmem:[%s6 + $0x70] sm:$0xff]
        %v2074 = vld [vmem:[%s6 + $0x78] sm:$0xff]
        %v2075 = vld [vmem:[%s6 + $0x80] sm:$0xff]
        %v2076 = vld [vmem:[%s6 + $0x88] sm:$0xff]
        %v2077 = vld [vmem:[%s6 + $0x90] sm:$0xff]
        %v2078 = vld [vmem:[%s6 + $0x98] sm:$0xff]
        %v2079 = vld [vmem:[%s6 + $0xa0] sm:$0xff]
        %v2080 = vld [vmem:[%s6 + $0xa8] sm:$0xff]
        %v2081 = vld [vmem:[%s6 + $0xb0] sm:$0xff]
        %v2082 = vld [vmem:[%s6 + $0xb8] sm:$0xff]
        %v2083 = vld [vmem:[%s6 + $0xc0] sm:$0xff]
        %v2084 = vld [vmem:[%s6 + $0xc8] sm:$0xff]
        %v2085 = vld [vmem:[%s6 + $0xd0] sm:$0xff]
        %v2086 = vld [vmem:[%s6 + $0xd8] sm:$0xff]
        %v2087 = vld [vmem:[%s6 + $0xe0] sm:$0xff]
        %v2088 = vld [vmem:[%s6 + $0xe8] sm:$0xff]
        %v2089 = vld [vmem:[%s6 + $0xf0] sm:$0xff]
        %v2090 = vld [vmem:[%s6 + $0xf8] sm:$0xff]
        %v2091 = vld [vmem:[%s7] sm:$0x1]
        %v2093 = vlaneseq
        %v2094 = vshrl.u32 %v2093, 7
        %v2095 = vsub.s32 0, %v2094
        %v2096 = vrot.slane %v2091, %v2095
        %2098 = vmatprep.subr.mxu0 0.0
        %2099 = vmatpush1.msra.mxu0 %v2059
        %2100 = vmatprep.subr.mxu0 0.0
        %2101 = vmatpush1.msra.mxu0 %v2060
        %2102 = vmatprep.subr.mxu0 0.0
        %2103 = vmatpush1.msra.mxu0 %v2061
        %2104 = vmatprep.subr.mxu0 0.0
        %2105 = vmatpush1.msra.mxu0 %v2062
        %2106 = vmatprep.subr.mxu0 0.0
        %2107 = vmatpush1.msra.mxu0 %v2063
        %2108 = vmatprep.subr.mxu0 0.0
        %2109 = vmatpush1.msra.mxu0 %v2064
        %2110 = vmatprep.subr.mxu0 0.0
        %2111 = vmatpush1.msra.mxu0 %v2065
        %2112 = vmatprep.subr.mxu0 0.0
        %2113 = vmatpush1.msra.mxu0 %v2066
        %2114 = vmatprep.subr.mxu0 0.0
        %2115 = vmatpush1.msra.mxu0 %v2067
        %2116 = vmatprep.subr.mxu0 0.0
        %2117 = vmatpush1.msra.mxu0 %v2068
        %2118 = vmatprep.subr.mxu0 0.0
        %2119 = vmatpush1.msra.mxu0 %v2069
        %2120 = vmatprep.subr.mxu0 0.0
        %2121 = vmatpush1.msra.mxu0 %v2070
        %2122 = vmatprep.subr.mxu0 0.0
        %2123 = vmatpush1.msra.mxu0 %v2071
        %2124 = vmatprep.subr.mxu0 0.0
        %2125 = vmatpush1.msra.mxu0 %v2072
        %2126 = vmatprep.subr.mxu0 0.0
        %2127 = vmatpush1.msra.mxu0 %v2073
        %2128 = vmatprep.subr.mxu0 0.0
        %2129 = vmatpush1.msra.mxu0 %v2074
        %2130 = vmatprep.subr.mxu0 0.0
        %2131 = vmatpush1.msra.mxu0 %v2075
        %2132 = vmatprep.subr.mxu0 0.0
        %2133 = vmatpush1.msra.mxu0 %v2076
        %2134 = vmatprep.subr.mxu0 0.0
        %2135 = vmatpush1.msra.mxu0 %v2077
        %2136 = vmatprep.subr.mxu0 0.0
        %2137 = vmatpush1.msra.mxu0 %v2078
        %2138 = vmatprep.subr.mxu0 0.0
        %2139 = vmatpush1.msra.mxu0 %v2079
        %2140 = vmatprep.subr.mxu0 0.0
        %2141 = vmatpush1.msra.mxu0 %v2080
        %2142 = vmatprep.subr.mxu0 0.0
        %2143 = vmatpush1.msra.mxu0 %v2081
        %2144 = vmatprep.subr.mxu0 0.0
        %2145 = vmatpush1.msra.mxu0 %v2082
        %2146 = vmatprep.subr.mxu0 0.0
        %2147 = vmatpush1.msra.mxu0 %v2083
        %2148 = vmatprep.subr.mxu0 0.0
        %2149 = vmatpush1.msra.mxu0 %v2084
        %2150 = vmatprep.subr.mxu0 0.0
        %2151 = vmatpush1.msra.mxu0 %v2085
        %2152 = vmatprep.subr.mxu0 0.0
        %2153 = vmatpush1.msra.mxu0 %v2086
        %2154 = vmatprep.subr.mxu0 0.0
        %2155 = vmatpush1.msra.mxu0 %v2087
        %2156 = vmatprep.subr.mxu0 0.0
        %2157 = vmatpush1.msra.mxu0 %v2088
        %2158 = vmatprep.subr.mxu0 0.0
        %2159 = vmatpush1.msra.mxu0 %v2089
        %2160 = vmatprep.subr.mxu0 0.0
        %2161 = vmatpush1.msra.mxu0 %v2090
        %2162 = vmatprep.mubr.f32.mxu0 %v1996
        %2163 = vmatmul.mubr.f32.gmra.mrb[0].mxu0 %v1995
        %v2164 = vpop.f32.mrb[0].mxu0
        %v2165 = vadd.f32 %v2096, %v2164
        %v2166 = vpop.f32.mrb[0].mxu0
        %2167 = vmatprep.mubr.f32.mxu0 %v1998
        %2168 = vmatmul.mubr.f32.gmra.mrb[0].mxu0 %v1997
        %v2169 = vpop.f32.mrb[0].mxu0
        %v2170 = vadd.f32 %v2096, %v2169
        %v2171 = vpop.f32.mrb[0].mxu0
        %2172 = vmatprep.mubr.f32.mxu0 %v2000
        %2173 = vmatmul.mubr.f32.gmra.mrb[0].mxu0 %v1999
        %v2174 = vpop.f32.mrb[0].mxu0
        %v2175 = vadd.f32 %v2096, %v2174
        %v2176 = vpop.f32.mrb[0].mxu0
        %2177 = vmatprep.mubr.f32.mxu0 %v2002
        %2178 = vmatmul.mubr.f32.gmra.mrb[0].mxu0 %v2001
        %v2179 = vpop.f32.mrb[0].mxu0
        %v2180 = vadd.f32 %v2096, %v2179
        %v2181 = vpop.f32.mrb[0].mxu0
        %2182 = vmatprep.mubr.f32.mxu0 %v2004
        %2183 = vmatmul.mubr.f32.gmra.mrb[0].mxu0 %v2003
        %v2184 = vpop.f32.mrb[0].mxu0
        %v2185 = vadd.f32 %v2096, %v2184
        %v2186 = vpop.f32.mrb[0].mxu0
        %2187 = vmatprep.mubr.f32.mxu0 %v2006
        %2188 = vmatmul.mubr.f32.gmra.mrb[0].mxu0 %v2005
        %v2189 = vpop.f32.mrb[0].mxu0
        %v2190 = vadd.f32 %v2096, %v2189
        %v2191 = vpop.f32.mrb[0].mxu0
        %2192 = vmatprep.mubr.f32.mxu0 %v2008
        %2193 = vmatmul.mubr.f32.gmra.mrb[0].mxu0 %v2007
        %v2194 = vpop.f32.mrb[0].mxu0
        %v2195 = vadd.f32 %v2096, %v2194
        %v2196 = vpop.f32.mrb[0].mxu0
        %2197 = vmatprep.mubr.f32.mxu0 %v2010
        %2198 = vmatmul.mubr.f32.gmra.mrb[0].mxu0 %v2009
        %v2199 = vpop.f32.mrb[0].mxu0
        %v2200 = vadd.f32 %v2096, %v2199
        %v2201 = vpop.f32.mrb[0].mxu0
        %2202 = vmatprep.mubr.f32.mxu0 %v2012
        %2203 = vmatmul.mubr.f32.gmra.mrb[0].mxu0 %v2011
        %v2204 = vpop.f32.mrb[0].mxu0
        %v2205 = vadd.f32 %v2096, %v2204
        %v2206 = vpop.f32.mrb[0].mxu0
        %2207 = vmatprep.mubr.f32.mxu0 %v2014
        %2208 = vmatmul.mubr.f32.gmra.mrb[0].mxu0 %v2013
        %v2209 = vpop.f32.mrb[0].mxu0
        %v2210 = vadd.f32 %v2096, %v2209
        %v2211 = vpop.f32.mrb[0].mxu0
        %2212 = vmatprep.mubr.f32.mxu0 %v2016
        %2213 = vmatmul.mubr.f32.gmra.mrb[0].mxu0 %v2015
        %v2214 = vpop.f32.mrb[0].mxu0
        %v2215 = vadd.f32 %v2096, %v2214
        %v2216 = vpop.f32.mrb[0].mxu0
        %2217 = vmatprep.mubr.f32.mxu0 %v2018
        %2218 = vmatmul.mubr.f32.gmra.mrb[0].mxu0 %v2017
        %v2219 = vpop.f32.mrb[0].mxu0
        %v2220 = vadd.f32 %v2096, %v2219
        %v2221 = vpop.f32.mrb[0].mxu0
        %2222 = vmatprep.mubr.f32.mxu0 %v2020
        %2223 = vmatmul.mubr.f32.gmra.mrb[0].mxu0 %v2019
        %v2224 = vpop.f32.mrb[0].mxu0
        %v2225 = vadd.f32 %v2096, %v2224
        %v2226 = vpop.f32.mrb[0].mxu0
        %2227 = vmatprep.mubr.f32.mxu0 %v2022
        %2228 = vmatmul.mubr.f32.gmra.mrb[0].mxu0 %v2021
        %v2229 = vpop.f32.mrb[0].mxu0
        %v2230 = vadd.f32 %v2096, %v2229
        %v2231 = vpop.f32.mrb[0].mxu0
        %2232 = vmatprep.mubr.f32.mxu0 %v2024
        %2233 = vmatmul.mubr.f32.gmra.mrb[0].mxu0 %v2023
        %v2234 = vpop.f32.mrb[0].mxu0
        %v2235 = vadd.f32 %v2096, %v2234
        %v2236 = vpop.f32.mrb[0].mxu0
        %2237 = vmatprep.mubr.f32.mxu0 %v2026
        %2238 = vmatmul.mubr.f32.gmra.mrb[0].mxu0 %v2025
        %v2239 = vpop.f32.mrb[0].mxu0
        %v2240 = vadd.f32 %v2096, %v2239
        %v2241 = vpop.f32.mrb[0].mxu0
        %2242 = vmatprep.mubr.f32.mxu0 %v2028
        %2243 = vmatmul.mubr.f32.gmra.mrb[0].mxu0 %v2027
        %v2244 = vpop.f32.mrb[0].mxu0
        %v2245 = vadd.f32 %v2096, %v2244
        %v2246 = vpop.f32.mrb[0].mxu0
        %2247 = vmatprep.mubr.f32.mxu0 %v2030
        %2248 = vmatmul.mubr.f32.gmra.mrb[0].mxu0 %v2029
        %v2249 = vpop.f32.mrb[0].mxu0
        %v2250 = vadd.f32 %v2096, %v2249
        %v2251 = vpop.f32.mrb[0].mxu0
        %2252 = vmatprep.mubr.f32.mxu0 %v2032
        %2253 = vmatmul.mubr.f32.gmra.mrb[0].mxu0 %v2031
        %v2254 = vpop.f32.mrb[0].mxu0
        %v2255 = vadd.f32 %v2096, %v2254
        %v2256 = vpop.f32.mrb[0].mxu0
        %2257 = vmatprep.mubr.f32.mxu0 %v2034
        %2258 = vmatmul.mubr.f32.gmra.mrb[0].mxu0 %v2033
        %v2259 = vpop.f32.mrb[0].mxu0
        %v2260 = vadd.f32 %v2096, %v2259
        %v2261 = vpop.f32.mrb[0].mxu0
        %2262 = vmatprep.mubr.f32.mxu0 %v2036
        %2263 = vmatmul.mubr.f32.gmra.mrb[0].mxu0 %v2035
        %v2264 = vpop.f32.mrb[0].mxu0
        %v2265 = vadd.f32 %v2096, %v2264
        %v2266 = vpop.f32.mrb[0].mxu0
        %2267 = vmatprep.mubr.f32.mxu0 %v2038
        %2268 = vmatmul.mubr.f32.gmra.mrb[0].mxu0 %v2037
        %v2269 = vpop.f32.mrb[0].mxu0
        %v2270 = vadd.f32 %v2096, %v2269
        %v2271 = vpop.f32.mrb[0].mxu0
        %2272 = vmatprep.mubr.f32.mxu0 %v2040
        %2273 = vmatmul.mubr.f32.gmra.mrb[0].mxu0 %v2039
        %v2274 = vpop.f32.mrb[0].mxu0
        %v2275 = vadd.f32 %v2096, %v2274
        %v2276 = vpop.f32.mrb[0].mxu0
        %2277 = vmatprep.mubr.f32.mxu0 %v2042
        %2278 = vmatmul.mubr.f32.gmra.mrb[0].mxu0 %v2041
        %v2279 = vpop.f32.mrb[0].mxu0
        %v2280 = vadd.f32 %v2096, %v2279
        %v2281 = vpop.f32.mrb[0].mxu0
        %2282 = vmatprep.mubr.f32.mxu0 %v2044
        %2283 = vmatmul.mubr.f32.gmra.mrb[0].mxu0 %v2043
        %v2284 = vpop.f32.mrb[0].mxu0
        %v2285 = vadd.f32 %v2096, %v2284
        %v2286 = vpop.f32.mrb[0].mxu0
        %2287 = vmatprep.mubr.f32.mxu0 %v2046
        %2288 = vmatmul.mubr.f32.gmra.mrb[0].mxu0 %v2045
        %v2289 = vpop.f32.mrb[0].mxu0
        %v2290 = vadd.f32 %v2096, %v2289
        %v2291 = vpop.f32.mrb[0].mxu0
        %2292 = vmatprep.mubr.f32.mxu0 %v2048
        %2293 = vmatmul.mubr.f32.gmra.mrb[0].mxu0 %v2047
        %v2294 = vpop.f32.mrb[0].mxu0
        %v2295 = vadd.f32 %v2096, %v2294
        %v2296 = vpop.f32.mrb[0].mxu0
        %2297 = vmatprep.mubr.f32.mxu0 %v2050
        %2298 = vmatmul.mubr.f32.gmra.mrb[0].mxu0 %v2049
        %v2299 = vpop.f32.mrb[0].mxu0
        %v2300 = vadd.f32 %v2096, %v2299
        %v2301 = vpop.f32.mrb[0].mxu0
        %2302 = vmatprep.mubr.f32.mxu0 %v2052
        %2303 = vmatmul.mubr.f32.gmra.mrb[0].mxu0 %v2051
        %v2304 = vpop.f32.mrb[0].mxu0
        %v2305 = vadd.f32 %v2096, %v2304
        %v2306 = vpop.f32.mrb[0].mxu0
        %2307 = vmatprep.mubr.f32.mxu0 %v2054
        %2308 = vmatmul.mubr.f32.gmra.mrb[0].mxu0 %v2053
        %v2309 = vpop.f32.mrb[0].mxu0
        %v2310 = vadd.f32 %v2096, %v2309
        %v2311 = vpop.f32.mrb[0].mxu0
        %2312 = vmatprep.mubr.f32.mxu0 %v2056
        %2313 = vmatmul.mubr.f32.gmra.mrb[0].mxu0 %v2055
        %v2314 = vpop.f32.mrb[0].mxu0
        %v2315 = vadd.f32 %v2096, %v2314
        %v2316 = vpop.f32.mrb[0].mxu0
        %2317 = vmatprep.mubr.f32.mxu0 %v2058
        %2318 = vmatmul.mubr.f32.gmra.mrb[0].mxu0 %v2057
        %v2319 = vpop.f32.mrb[0].mxu0
        %v2320 = vadd.f32 %v2096, %v2319
        %v2321 = vpop.f32.mrb[0].mxu0
        %2322 = vdwg.mxu0
        %v2323 = vmax.f32 %v2165, 0.0
        %v2324 = vmax.f32 %v2170, 0.0
        %v2325 = vmax.f32 %v2175, 0.0
        %v2326 = vmax.f32 %v2180, 0.0
        %v2327 = vmax.f32 %v2185, 0.0
        %v2328 = vmax.f32 %v2190, 0.0
        %v2329 = vmax.f32 %v2195, 0.0
        %v2330 = vmax.f32 %v2200, 0.0
        %v2331 = vmax.f32 %v2205, 0.0
        %v2332 = vmax.f32 %v2210, 0.0
        %v2333 = vmax.f32 %v2215, 0.0
        %v2334 = vmax.f32 %v2220, 0.0
        %v2335 = vmax.f32 %v2225, 0.0
        %v2336 = vmax.f32 %v2230, 0.0
        %v2337 = vmax.f32 %v2235, 0.0
        %v2338 = vmax.f32 %v2240, 0.0
        %v2339 = vmax.f32 %v2245, 0.0
        %v2340 = vmax.f32 %v2250, 0.0
        %v2341 = vmax.f32 %v2255, 0.0
        %v2342 = vmax.f32 %v2260, 0.0
        %v2343 = vmax.f32 %v2265, 0.0
        %v2344 = vmax.f32 %v2270, 0.0
        %v2345 = vmax.f32 %v2275, 0.0
        %v2346 = vmax.f32 %v2280, 0.0
        %v2347 = vmax.f32 %v2285, 0.0
        %v2348 = vmax.f32 %v2290, 0.0
        %v2349 = vmax.f32 %v2295, 0.0
        %v2350 = vmax.f32 %v2300, 0.0
        %v2351 = vmax.f32 %v2305, 0.0
        %v2352 = vmax.f32 %v2310, 0.0
        %v2353 = vmax.f32 %v2315, 0.0
        %v2354 = vmax.f32 %v2320, 0.0
        %v2355 = vld [vmem:[%s8] sm:$0xff]
        %2356 = vmatprep.subr.mxu0 0.0
        %2357 = vmatpush1.xpose.msra.mxu0 %v2323
        %2358 = vmatprep.subr.mxu0 0.0
        %2359 = vmatpush1.xpose.msra.mxu0 %v2324
        %2360 = vmatprep.subr.mxu0 0.0
        %2361 = vmatpush1.xpose.msra.mxu0 %v2325
        %2362 = vmatprep.subr.mxu0 0.0
        %2363 = vmatpush1.xpose.msra.mxu0 %v2326
        %2364 = vmatprep.subr.mxu0 0.0
        %2365 = vmatpush1.xpose.msra.mxu0 %v2327
        %2366 = vmatprep.subr.mxu0 0.0
        %2367 = vmatpush1.xpose.msra.mxu0 %v2328
        %2368 = vmatprep.subr.mxu0 0.0
        %2369 = vmatpush1.xpose.msra.mxu0 %v2329
        %2370 = vmatprep.subr.mxu0 0.0
        %2371 = vmatpush1.xpose.msra.mxu0 %v2330
        %2372 = vmatprep.subr.mxu0 0.0
        %2373 = vmatpush1.xpose.msra.mxu0 %v2331
        %2374 = vmatprep.subr.mxu0 0.0
        %2375 = vmatpush1.xpose.msra.mxu0 %v2332
        %2376 = vmatprep.subr.mxu0 0.0
        %2377 = vmatpush1.xpose.msra.mxu0 %v2333
        %2378 = vmatprep.subr.mxu0 0.0
        %2379 = vmatpush1.xpose.msra.mxu0 %v2334
        %2380 = vmatprep.subr.mxu0 0.0
        %2381 = vmatpush1.xpose.msra.mxu0 %v2335
        %2382 = vmatprep.subr.mxu0 0.0
        %2383 = vmatpush1.xpose.msra.mxu0 %v2336
        %2384 = vmatprep.subr.mxu0 0.0
        %2385 = vmatpush1.xpose.msra.mxu0 %v2337
        %2386 = vmatprep.subr.mxu0 0.0
        %2387 = vmatpush1.xpose.msra.mxu0 %v2338
        %2388 = vmatprep.subr.mxu0 0.0
        %2389 = vmatpush1.xpose.msra.mxu0 %v2339
        %2390 = vmatprep.subr.mxu0 0.0
        %2391 = vmatpush1.xpose.msra.mxu0 %v2340
        %2392 = vmatprep.subr.mxu0 0.0
        %2393 = vmatpush1.xpose.msra.mxu0 %v2341
        %2394 = vmatprep.subr.mxu0 0.0
        %2395 = vmatpush1.xpose.msra.mxu0 %v2342
        %2396 = vmatprep.subr.mxu0 0.0
        %2397 = vmatpush1.xpose.msra.mxu0 %v2343
        %2398 = vmatprep.subr.mxu0 0.0
        %2399 = vmatpush1.xpose.msra.mxu0 %v2344
        %2400 = vmatprep.subr.mxu0 0.0
        %2401 = vmatpush1.xpose.msra.mxu0 %v2345
        %2402 = vmatprep.subr.mxu0 0.0
        %2403 = vmatpush1.xpose.msra.mxu0 %v2346
        %2404 = vmatprep.subr.mxu0 0.0
        %2405 = vmatpush1.xpose.msra.mxu0 %v2347
        %2406 = vmatprep.subr.mxu0 0.0
        %2407 = vmatpush1.xpose.msra.mxu0 %v2348
        %2408 = vmatprep.subr.mxu0 0.0
        %2409 = vmatpush1.xpose.msra.mxu0 %v2349
        %2410 = vmatprep.subr.mxu0 0.0
        %2411 = vmatpush1.xpose.msra.mxu0 %v2350
        %2412 = vmatprep.subr.mxu0 0.0
        %2413 = vmatpush1.xpose.msra.mxu0 %v2351
        %2414 = vmatprep.subr.mxu0 0.0
        %2415 = vmatpush1.xpose.msra.mxu0 %v2352
        %2416 = vmatprep.subr.mxu0 0.0
        %2417 = vmatpush1.xpose.msra.mxu0 %v2353
        %2418 = vmatprep.subr.mxu0 0.0
        %2419 = vmatpush1.xpose.msra.mxu0 %v2354
        %2420 = vmatprep.mubr.f32.mxu0 0.0
        %2421 = vmatmul.mubr.f32.gmra.mrb[0].mxu0 %v2355
        %v2422 = vpop.f32.mrb[0].mxu0
        %v2423 = vadd.f32 0.0, %v2422
        %v2424 = vpop.f32.mrb[0].mxu0
        %v2425 = vadd.f32 0.0, %v2424
        %2426 = vdwg.mxu0
        %s2427 = sld [smem:[#allocation2]]
        %v2428 = vstv %s2427
        %v2429 = vadd.f32 %v2423, %v2428
        %v2430 = vadd.f32 %v2425, %v2428
        %v2433 = vcombine.low %v2429, %v2430
        %v2435 = vunpack.c.l.s4 1966171168
        %v2436 = vunpack.c.0.s8 %v2435
        %v2437 = vlaneseq
        %v2438 = vshrl.u32 %v2437, 7
        %v2439 = vsub.s32 %v2436, %v2438
        %v2440 = vrot.slane %v2433, %v2439
        %v2442 = vunpack.c.l.s4 1966171168
        %v2443 = vunpack.c.0.s8 %v2442
        %v2444 = vlaneseq
        %v2445 = vshrl.u32 %v2444, 7
        %v2446 = vsub.s32 %v2443, %v2445
        %v2447 = vrot.slane %v2440, %v2446
        %v2449 = vlaneseq
        %vm2450 = vcmp.ge.s32.totalorder %v2449, 0
        %vm2451 = vcmp.lt.s32.totalorder %v2449, 256
        %vm2452 = vmand %vm2450, %vm2451
        %2453 = vst.msk [vmem:[%s370] sm:$0x3] %vm2452, %v2447
        %s2454 = sand.u32 %s253, 1
        %s2455 = scalar_lea.sflag [#allocation4], %s2454
        %s2456 = sand.u32 %s253, 1
        %s2457 = smul.addr %s2456, 2
        %s2458 = scalar_lea.vmem [#allocation3], %s2457
        // Predicated region
        $region61: #{tpu_custom_call.1} parent=59 // pred_check
          %p2459 = pneg %p263
        $region62: #{tpu_custom_call.1} parent=59 // pred_check_branch
          %2461 = sbr.rel (%p2459) target = $region64
        $region63: #{tpu_custom_call.1} parent=59 // pred_region
          %s2462 = smul.u32 2, %s25
          %s2464 = ssub.s32 32, 32
          %2465 = vsyncadd %s2455, %s2464
          %s2466 = smul.addr %s2462, 16
          %s2467 = scalar_lea.hbm %s10, %s2466
          %s2469 = sshll.u32 %s2458, 4
          %s2470 = int_to_ptr.vmem [resolvable:$true] %s2469
          %2472 = dma.vmem_to_hbm [thread:$0]  %s2470, 32, %s2467, %s2455
        $region64: #{tpu_custom_call.1} parent=59 // pred_fallthru
          _
      $region60: #{tpu_custom_call.1} parent=5 // pred_fallthru
        _
      %p2473 = scmp.le.s32.totalorder 2, %s20
      // Predicated region
      $region65: #{tpu_custom_call.1} parent=5 // pred_check
        %p2474 = pneg %p2473
      $region66: #{tpu_custom_call.1} parent=5 // pred_check_branch
        %2476 = sbr.rel (%p2474) target = $region68
      $region67: #{tpu_custom_call.1} parent=5 // pred_region
        %s2477 = ssub.s32 %s20, 2
        // Predicated region
        $region69: #{tpu_custom_call.1} parent=67 // pred_check
          %p2478 = pneg %p269
        $region70: #{tpu_custom_call.1} parent=67 // pred_check_branch
          %2480 = sbr.rel (%p2478) target = $region72
        $region71: #{tpu_custom_call.1} parent=67 // pred_region
          %s2481 = sand.u32 %s254, 1
          %s2482 = scalar_lea.sflag [#allocation4], %s2481
          %s2483 = sand.u32 %s254, 1
          %s2484 = smul.addr %s2483, 2
          %s2485 = scalar_lea.vmem [#allocation3], %s2484
          %2486 = dma.done %s2482, 32
        $region72: #{tpu_custom_call.1} parent=67 // pred_fallthru
          _
      $region68: #{tpu_custom_call.1} parent=5 // pred_fallthru
        _
    $region6: #{tpu_custom_call.1} parent=1 // loop_footer
      %s24 = sadd.s32 1, %s20
    $region7: #{tpu_custom_call.1} parent=1 // loop_footer_branch
      %19 = sbr.rel target = $region3
    $region8: #{tpu_custom_call.1} parent=1 // loop_exit
      _
    %2487 = vsyncpa [#allocation4], 1
    %s2488 = scalar_lea.sflag [#allocation4], 1
    %2489 = vsyncpa %s2488, 1

</llo_original>
